<compile_context>
chip_gen: v7x
topology: tpu7x:2x2x1
jax: 0.10.0
libtpu: 0.0.40
codegen_flags: <defaults>
</compile_context>

<pallas_src>
import numpy as np
import jax
import jax.numpy as jnp
from jax import lax
from jax.experimental import pallas as pl
from jax.experimental.pallas import tpu as pltpu


# ----------------------------------------------------------------------------
# Per-generation VMEM sizing & row tiling
# ----------------------------------------------------------------------------
def _vmem_params():
    """(per-step working-set budget, scoped vmem_limit_bytes) for this chip."""
    cap = None
    try:
        info = pltpu.get_tpu_info()
        cap = getattr(info, "vmem_capacity_bytes", None) or \
              getattr(info, "vmem_size_bytes", None)
    except Exception:
        cap = None
    if not cap or cap <= 0:
        cap = 64 * 1024 * 1024           # conservative (v7x-safe) fallback
    limit = (int(cap) * 3) // 4          # ~25% headroom for Mosaic scratch
    budget = (int(cap) * 3) // 8         # per-step working-set target
    return int(budget), int(limit)


def _pick_row_tile(H, per_row_bytes, budget_bytes, min_tiles=1):
    """Largest divisor of H whose per-step VMEM estimate fits the budget."""
    max_th = max(1, int(budget_bytes // max(per_row_bytes, 1)))
    if min_tiles > 1:
        max_th = min(max_th, max(1, H // min_tiles))
    best = 1
    for cand in range(1, H + 1):
        if H % cand == 0 and cand <= max_th:
            best = cand
    return best
    # TODO(synk): allow non-divisor tiles (grid = cdiv(H, th) + masked last
    # strip) for feature maps whose H has only tiny divisors.


def _fold_phase_weights(w):
    """Fold a (3, 3, Cin, Cout) kernel into (4, 4*Cin, Cout) phase weights.

    For nearest-2x upsampling, output pixel (2i+a, 2j+b) of the 3x3 conv only
    depends on low-res pixels x[i-1+a+dy, j-1+b+dx], dy/dx in {0, 1}.  Phase
    index p = a*2 + b; the 4*Cin input-channel blocks are ordered by
    (dy, dx) in [(0,0), (0,1), (1,0), (1,1)].  Adds only, so exact in f32.
    """
    rows = [[w[0], w[1] + w[2]],        # a = 0: taps at rows (i-1, i)
            [w[0] + w[1], w[2]]]        # a = 1: taps at rows (i, i+1)
    taps = []
    for a in range(2):
        for b in range(2):
            for dy in range(2):
                r = rows[a][dy]                      # (3, Cin, Cout) over kx
                cols = [[r[0], r[1] + r[2]],         # b = 0: cols (j-1, j)
                        [r[0] + r[1], r[2]]]         # b = 1: cols (j, j+1)
                for dx in range(2):
                    taps.append(cols[b][dx])
    w16 = jnp.stack(taps, axis=0)                    # (16, Cin, Cout)
    cin, cout = w.shape[2], w.shape[3]
    return w16.reshape(4, 4 * cin, cout)


# ----------------------------------------------------------------------------
# Kernels (NHWC inside: channels on the lane axis)
# ----------------------------------------------------------------------------
def _upsample_only_kernel(x_ref, o_ref):
    # x_ref : (1, th, W, C)
    # o_ref : (1, th, 2, W, 2C)   -- free view of the (2*th, 2W, C) strip
    x = x_ref[0]                                     # (th, W, C)
    xx = jnp.concatenate([x, x], axis=-1)            # lane duplication
    o_ref[0, :, 0, :, :] = xx
    o_ref[0, :, 1, :, :] = xx


def _upsample_conv_kernel(x_ref, top_ref, bot_ref, w_ref, b_ref, o_ref):
    # x_ref   : (1, th, W, C)     low-res strip
    # top_ref : (1, 1,  W, C)     row above the strip (zeros at image top)
    # bot_ref : (1, 1,  W, C)     row below the strip (zeros at image bottom)
    # w_ref   : (4, 4C, C)        folded phase weights (MXU dtype)
    # b_ref   : (1, C)            bias, f32
    # o_ref   : (1, th, 2, W, 2C) free view of the (2*th, 2W, C) strip
    _, th, W, C = x_ref.shape

    # Low-res strip + 1-row halo + 1-col zero pad, cast once to the MXU dtype.
    ext = jnp.concatenate([top_ref[0], x_ref[0], bot_ref[0]],
                          axis=0).astype(w_ref.dtype)
    ext = jnp.pad(ext, ((0, 0), (1, 1), (0, 0)))     # (th + 2, W + 2, C)

    bias = b_ref[...].astype(jnp.float32)            # (1, C), broadcast on add

    for a in range(2):
        for b in range(2):
            # Channel-stack the four (dy, dx) taps -> one K = 4C matmul per
            # phase (fills the MXU; accumulation stays in the matmul path).
            op = jnp.concatenate(
                [ext[a + dy:a + dy + th, b + dx:b + dx + W, :]
                 for dy in range(2) for dx in range(2)],
                axis=-1)                             # (th, W, 4C)
            y = jnp.dot(op.reshape(th * W, 4 * C), w_ref[a * 2 + b],
                        preferred_element_type=jnp.float32) + bias
            # Plain contiguous store of the phase: out[2i+a, 2j+b, :].
            o_ref[0, :, a, :, b * C:(b + 1) * C] = (
                y.astype(o_ref.dtype).reshape(th, W, C))


# ----------------------------------------------------------------------------
# Wrapper module
# ----------------------------------------------------------------------------
class Upsample:
    """Pallas-TPU port of vqgan_arch.Upsample (nearest 2x [+ 3x3 conv])."""

    def __init__(self, in_channels, with_conv, key=None, data_format="NCHW",
                 use_bf16_matmul=False):
        assert data_format in ("NCHW", "NHWC")
        self.in_channels = in_channels
        self.with_conv = with_conv
        self.data_format = data_format
        self.use_bf16_matmul = use_bf16_matmul
        if self.with_conv:
            if key is None:
                key = jax.random.PRNGKey(0)
            kw, kb = jax.random.split(key)
            fan_in = in_channels * 3 * 3
            bound = 1.0 / np.sqrt(fan_in)
            # weight stored as (kh, kw, Cin, Cout)
            self.weight = jax.random.uniform(
                kw, (3, 3, in_channels, in_channels),
                minval=-bound, maxval=bound, dtype=jnp.float32)
            self.bias = jax.random.uniform(
                kb, (in_channels,), minval=-bound, maxval=bound,
                dtype=jnp.float32)
            self._folded_weight = _fold_phase_weights(self.weight)  # (4,4C,C)

    def __call__(self, x):
        if self.data_format == "NCHW":
            # TODO(synk): fuse the NCHW<->NHWC relayout into the kernel; each
            # wrapper transpose is a full HBM round trip.  Callers that can
            # should use data_format="NHWC".
            x_nhwc = jnp.transpose(x, (0, 2, 3, 1))
        else:
            x_nhwc = x
        y_nhwc = self._forward_nhwc(x_nhwc)
        if self.data_format == "NCHW":
            return jnp.transpose(y_nhwc, (0, 3, 1, 2))
        return y_nhwc

    def _forward_nhwc(self, x):
        B, H, W, C = x.shape
        assert C == self.in_channels
        H2, W2 = 2 * H, 2 * W                 # nearest, scale_factor = 2 only
        isz = x.dtype.itemsize
        budget, vmem_limit = _vmem_params()
        min_tiles = 2 if (B == 1 and H > 1) else 1   # v7x megacore occupancy

        if not self.with_conv:
            per_row = 16 * W * C * isz        # dbuf in(2)+out(8)+lane-dup temp
            th = _pick_row_tile(H, per_row, budget, min_tiles)
            nt = H // th
            y5 = pl.pallas_call(
                _upsample_only_kernel,
                out_shape=jax.ShapeDtypeStruct((B, H, 2, W, 2 * C), x.dtype),
                grid=(B, nt),
                in_specs=[pl.BlockSpec((1, th, W, C),
                                       lambda b, r: (b, r, 0, 0))],
                out_specs=pl.BlockSpec((1, th, 2, W, 2 * C),
                                       lambda b, r: (b, r, 0, 0, 0)),
                compiler_params=pltpu.CompilerParams(
                    dimension_semantics=("parallel", "parallel"),
                    vmem_limit_bytes=vmem_limit),
            )(x)
            # (B, H, 2, W, 2C) -> (B, 2H, 2W, C) is a metadata-only relabel.
            return y5.reshape(B, H2, W2, C)

        # ----- conv path -----------------------------------------------------
        mxu_dtype = (jnp.bfloat16
                     if (self.use_bf16_matmul or x.dtype == jnp.bfloat16)
                     else x.dtype)
        mxu_isz = jnp.dtype(mxu_dtype).itemsize
        wp = self._folded_weight.astype(mxu_dtype)              # (4, 4C, C)
        bias2d = self.bias.reshape(1, C).astype(jnp.float32)

        # TODO(synk): single-buffer the constant weight/bias blocks
        # (pipeline_mode=pl.Buffered(1)) once broadly supported; for now the
        # double-buffered copy is simply charged to the tile budget.
        weight_vmem = 2 * (4 * 4 * C * C * mxu_isz + 4 * C)
        per_row = int(1.25 * ((2 + 8) * W * C * isz     # dbuf in + out blocks
                              + (W + 2) * C * mxu_isz   # padded low-res tile
                              + 8 * W * C * mxu_isz     # ~2 live K=4C operands
                              + 2 * W * C * 4))         # ~2 live f32 results
        th = _pick_row_tile(H, per_row,
                            max(budget - weight_vmem, 2 * 1024 * 1024),
                            min_tiles)
        nt = H // th

        # Halo rows: the row above / below each strip (zeros at image border).
        zero_row = jnp.zeros((B, 1, W, C), x.dtype)
        if nt > 1:
            top = jnp.concatenate([zero_row, x[:, th - 1:H - 1:th, :, :]],
                                  axis=1)
            bot = jnp.concatenate([x[:, th:H:th, :, :], zero_row], axis=1)
        else:
            top = zero_row
            bot = zero_row
        # TODO(synk): replace the halo side-arrays with one overlapping
        # pl.Element-indexed input block to drop the extra DMA streams.

        cost = pl.CostEstimate(
            flops=32 * B * H * W * C * C,
            transcendentals=0,
            bytes_accessed=((B * H * W * C + 2 * B * nt * W * C) * isz
                            + B * H2 * W2 * C * isz
                            + 16 * C * C * mxu_isz + 4 * C))

        halo_spec = pl.BlockSpec((1, 1, W, C), lambda b, r: (b, r, 0, 0))
        y5 = pl.pallas_call(
            _upsample_conv_kernel,
            out_shape=jax.ShapeDtypeStruct((B, H, 2, W, 2 * C), x.dtype),
            grid=(B, nt),
            in_specs=[
                pl.BlockSpec((1, th, W, C), lambda b, r: (b, r, 0, 0)),
                halo_spec,
                halo_spec,
                pl.BlockSpec((4, 4 * C, C), lambda b, r: (0, 0, 0)),
                pl.BlockSpec((1, C), lambda b, r: (0, 0)),
            ],
            out_specs=pl.BlockSpec((1, th, 2, W, 2 * C),
                                   lambda b, r: (b, r, 0, 0, 0)),
            compiler_params=pltpu.CompilerParams(
                dimension_semantics=("parallel", "parallel"),
                vmem_limit_bytes=vmem_limit),
            cost_estimate=cost,
        )(x, top, bot, wp, bias2d)
        # (B, H, 2, W, 2C) -> (B, 2H, 2W, C) is a metadata-only relabel.
        return y5.reshape(B, H2, W2, C)


# ----------------------------------------------------------------------------
# Pure-JAX reference for verification
# ----------------------------------------------------------------------------
def _reference(x_nchw, weight_khkwio, bias, with_conv):
    up = jnp.repeat(jnp.repeat(x_nchw, 2, axis=2), 2, axis=3)
    if not with_conv:
        return up
    w_oihw = jnp.transpose(weight_khkwio, (3, 2, 0, 1))
    y = lax.conv_general_dilated(
        up, w_oihw, window_strides=(1, 1), padding=((1, 1), (1, 1)),
        dimension_numbers=("NCHW", "OIHW", "NCHW"))
    return y + bias[None, :, None, None]


if __name__ == "__main__":
    key = jax.random.PRNGKey(0)
    kx, kp = jax.random.split(key)

    B, C, H, W = 2, 4, 16, 16
    x = jax.random.normal(kx, (B, C, H, W), dtype=jnp.float32)

    # with_conv = True (phase-decomposed, K=4C fused conv kernel), NCHW path
    mod = Upsample(in_channels=C, with_conv=True, key=kp)
    y = jax.block_until_ready(mod(x))
    assert y.shape == (B, C, 2 * H, 2 * W), y.shape
    y_ref = _reference(x, mod.weight, mod.bias, with_conv=True)
    np.testing.assert_allclose(np.asarray(y), np.asarray(y_ref),
                               rtol=1e-4, atol=1e-4)

    # with_conv = False (tiled nearest-neighbour upsample kernel)
    mod2 = Upsample(in_channels=C, with_conv=False)
    y2 = jax.block_until_ready(mod2(x))
    y2_ref = _reference(x, None, None, with_conv=False)
    np.testing.assert_allclose(np.asarray(y2), np.asarray(y2_ref),
                               rtol=0, atol=0)

    # NHWC fast path (skips the wrapper transposes) must agree with NCHW path.
    mod3 = Upsample(in_channels=C, with_conv=True, key=kp, data_format="NHWC")
    y3 = jax.block_until_ready(mod3(jnp.transpose(x, (0, 2, 3, 1))))
    np.testing.assert_allclose(np.asarray(jnp.transpose(y3, (0, 3, 1, 2))),
                               np.asarray(y_ref), rtol=1e-4, atol=1e-4)

    # Opt-in bf16 MXU operands (f32 accumulation): looser tolerance.
    mod4 = Upsample(in_channels=C, with_conv=True, key=kp,
                    use_bf16_matmul=True)
    y4 = jax.block_until_ready(mod4(x))
    np.testing.assert_allclose(np.asarray(y4), np.asarray(y_ref),
                               rtol=5e-2, atol=5e-2)

    print("KERNEL_OK")
</pallas_src>

<mosaic_0001>
module attributes {stable_mosaic.version = 11 : i64} {
  func.func @_upsample_conv_kernel(%arg0: i32, %arg1: i32, %arg2: memref<1x16x16x4xf32, #tpu.memory_space<vmem>>, %arg3: memref<1x1x16x4xf32, #tpu.memory_space<vmem>>, %arg4: memref<1x1x16x4xf32, #tpu.memory_space<vmem>>, %arg5: memref<4x16x4xf32, #tpu.memory_space<vmem>>, %arg6: memref<1x4xf32, #tpu.memory_space<vmem>>, %arg7: memref<1x16x2x16x8xf32, #tpu.memory_space<vmem>>) attributes {dimension_semantics = [#tpu.dimension_semantics<parallel>, #tpu.dimension_semantics<parallel>], iteration_bounds = array<i64: 2, 1>, scalar_prefetch = 0 : i64, scratch_operands = 0 : i64, tpu.core_type = #tpu.core_type<tc>, window_params = [{transform_indices = @transform_0, window_bounds = array<i64: 1, 16, 16, 4>}, {transform_indices = @transform_1, window_bounds = array<i64: 1, 1, 16, 4>}, {transform_indices = @transform_2, window_bounds = array<i64: 1, 1, 16, 4>}, {pipeline_mode = #tpu.pipeline_mode<synchronous>, transform_indices = @transform_3, window_bounds = array<i64: 4, 16, 4>}, {pipeline_mode = #tpu.pipeline_mode<synchronous>, transform_indices = @transform_4, window_bounds = array<i64: 1, 4>}, {transform_indices = @transform_5, window_bounds = array<i64: 1, 16, 2, 16, 8>}]} {
    %c0 = arith.constant 0 : index
    %c0_0 = arith.constant 0 : index
    %c0_1 = arith.constant 0 : index
    %c0_2 = arith.constant 0 : index
    %0 = vector.load %arg3[%c0, %c0_0, %c0_1, %c0_2] : memref<1x1x16x4xf32, #tpu.memory_space<vmem>>, vector<1x1x16x4xf32>
    %1 = vector.shape_cast %0 : vector<1x1x16x4xf32> to vector<1x16x4xf32>
    %c0_3 = arith.constant 0 : index
    %c0_4 = arith.constant 0 : index
    %c0_5 = arith.constant 0 : index
    %c0_6 = arith.constant 0 : index
    %2 = vector.load %arg2[%c0_3, %c0_4, %c0_5, %c0_6] : memref<1x16x16x4xf32, #tpu.memory_space<vmem>>, vector<1x16x16x4xf32>
    %3 = vector.shape_cast %2 : vector<1x16x16x4xf32> to vector<16x16x4xf32>
    %c0_7 = arith.constant 0 : index
    %c0_8 = arith.constant 0 : index
    %c0_9 = arith.constant 0 : index
    %c0_10 = arith.constant 0 : index
    %4 = vector.load %arg4[%c0_7, %c0_8, %c0_9, %c0_10] : memref<1x1x16x4xf32, #tpu.memory_space<vmem>>, vector<1x1x16x4xf32>
    %5 = vector.shape_cast %4 : vector<1x1x16x4xf32> to vector<1x16x4xf32>
    %6 = tpu.concatenate %1, %3, %5 in 0 : vector<1x16x4xf32>, vector<16x16x4xf32>, vector<1x16x4xf32> -> vector<18x16x4xf32>
    %c0_i32 = arith.constant 0 : i32
    %7 = arith.sitofp %c0_i32 : i32 to f32
    %8 = vector.broadcast %7 : f32 to vector<18x1x4xf32>
    %9 = tpu.concatenate %8, %6 in 1 : vector<18x1x4xf32>, vector<18x16x4xf32> -> vector<18x17x4xf32>
    %10 = vector.broadcast %7 : f32 to vector<18x1x4xf32>
    %11 = tpu.concatenate %9, %10 in 1 : vector<18x17x4xf32>, vector<18x1x4xf32> -> vector<18x18x4xf32>
    %c0_11 = arith.constant 0 : index
    %c0_12 = arith.constant 0 : index
    %12 = vector.load %arg6[%c0_11, %c0_12] : memref<1x4xf32, #tpu.memory_space<vmem>>, vector<1x4xf32>
    %13 = vector.extract_strided_slice %11 {offsets = [0, 0, 0], sizes = [16, 16, 4], strides = [1, 1, 1]} : vector<18x18x4xf32> to vector<16x16x4xf32>
    %14 = vector.extract_strided_slice %11 {offsets = [0, 1, 0], sizes = [16, 16, 4], strides = [1, 1, 1]} : vector<18x18x4xf32> to vector<16x16x4xf32>
    %15 = vector.extract_strided_slice %11 {offsets = [1, 0, 0], sizes = [16, 16, 4], strides = [1, 1, 1]} : vector<18x18x4xf32> to vector<16x16x4xf32>
    %16 = vector.extract_strided_slice %11 {offsets = [1, 1, 0], sizes = [16, 16, 4], strides = [1, 1, 1]} : vector<18x18x4xf32> to vector<16x16x4xf32>
    %17 = tpu.concatenate %13, %14, %15, %16 in 2 : vector<16x16x4xf32>, vector<16x16x4xf32>, vector<16x16x4xf32>, vector<16x16x4xf32> -> vector<16x16x16xf32>
    %18 = vector.shape_cast %17 : vector<16x16x16xf32> to vector<256x16xf32>
    %c0_13 = arith.constant 0 : index
    %c0_14 = arith.constant 0 : index
    %c0_15 = arith.constant 0 : index
    %19 = vector.load %arg5[%c0_13, %c0_14, %c0_15] : memref<4x16x4xf32, #tpu.memory_space<vmem>>, vector<1x16x4xf32>
    %20 = vector.shape_cast %19 : vector<1x16x4xf32> to vector<16x4xf32>
    %cst = arith.constant dense<0.000000e+00> : vector<256x4xf32>
    %21 = tpu.matmul %18, %20, %cst {dimension_numbers = #tpu.dot_dimension_numbers<[1], [0], [0], [1], [0, 0, 1, 1], [], []>} : vector<256x16xf32>, vector<16x4xf32>, vector<256x4xf32> -> vector<256x4xf32>
    %22 = vector.broadcast %12 : vector<1x4xf32> to vector<256x4xf32>
    %23 = arith.addf %21, %22 : vector<256x4xf32>
    %24 = vector.shape_cast %23 : vector<256x4xf32> to vector<16x16x4xf32>
    %c0_16 = arith.constant 0 : index
    %c0_17 = arith.constant 0 : index
    %c0_18 = arith.constant 0 : index
    %c0_19 = arith.constant 0 : index
    %c0_20 = arith.constant 0 : index
    %25 = vector.load %arg7[%c0_16, %c0_17, %c0_18, %c0_19, %c0_20] : memref<1x16x2x16x8xf32, #tpu.memory_space<vmem>>, vector<1x16x1x16x4xf32>
    %26 = vector.shape_cast %25 : vector<1x16x1x16x4xf32> to vector<16x16x4xf32>
    %27 = vector.shape_cast %24 : vector<16x16x4xf32> to vector<1x16x1x16x4xf32>
    tpu.vector_store %arg7[%c0_16, %c0_17, %c0_18, %c0_19, %c0_20], %27 {strides = array<i32>} : memref<1x16x2x16x8xf32, #tpu.memory_space<vmem>>, vector<1x16x1x16x4xf32>,
    %28 = vector.extract_strided_slice %11 {offsets = [0, 1, 0], sizes = [16, 16, 4], strides = [1, 1, 1]} : vector<18x18x4xf32> to vector<16x16x4xf32>
    %29 = vector.extract_strided_slice %11 {offsets = [0, 2, 0], sizes = [16, 16, 4], strides = [1, 1, 1]} : vector<18x18x4xf32> to vector<16x16x4xf32>
    %30 = vector.extract_strided_slice %11 {offsets = [1, 1, 0], sizes = [16, 16, 4], strides = [1, 1, 1]} : vector<18x18x4xf32> to vector<16x16x4xf32>
    %31 = vector.extract_strided_slice %11 {offsets = [1, 2, 0], sizes = [16, 16, 4], strides = [1, 1, 1]} : vector<18x18x4xf32> to vector<16x16x4xf32>
    %32 = tpu.concatenate %28, %29, %30, %31 in 2 : vector<16x16x4xf32>, vector<16x16x4xf32>, vector<16x16x4xf32>, vector<16x16x4xf32> -> vector<16x16x16xf32>
    %33 = vector.shape_cast %32 : vector<16x16x16xf32> to vector<256x16xf32>
    %c1 = arith.constant 1 : index
    %c0_21 = arith.constant 0 : index
    %c0_22 = arith.constant 0 : index
    %34 = vector.load %arg5[%c1, %c0_21, %c0_22] : memref<4x16x4xf32, #tpu.memory_space<vmem>>, vector<1x16x4xf32>
    %35 = vector.shape_cast %34 : vector<1x16x4xf32> to vector<16x4xf32>
    %cst_23 = arith.constant dense<0.000000e+00> : vector<256x4xf32>
    %36 = tpu.matmul %33, %35, %cst_23 {dimension_numbers = #tpu.dot_dimension_numbers<[1], [0], [0], [1], [0, 0, 1, 1], [], []>} : vector<256x16xf32>, vector<16x4xf32>, vector<256x4xf32> -> vector<256x4xf32>
    %37 = vector.broadcast %12 : vector<1x4xf32> to vector<256x4xf32>
    %38 = arith.addf %36, %37 : vector<256x4xf32>
    %39 = vector.shape_cast %38 : vector<256x4xf32> to vector<16x16x4xf32>
    %c0_24 = arith.constant 0 : index
    %c0_25 = arith.constant 0 : index
    %c0_26 = arith.constant 0 : index
    %c0_27 = arith.constant 0 : index
    %c4 = arith.constant 4 : index
    %40 = vector.load %arg7[%c0_24, %c0_25, %c0_26, %c0_27, %c4] : memref<1x16x2x16x8xf32, #tpu.memory_space<vmem>>, vector<1x16x1x16x4xf32>
    %41 = vector.shape_cast %40 : vector<1x16x1x16x4xf32> to vector<16x16x4xf32>
    %42 = vector.shape_cast %39 : vector<16x16x4xf32> to vector<1x16x1x16x4xf32>
    tpu.vector_store %arg7[%c0_24, %c0_25, %c0_26, %c0_27, %c4], %42 {strides = array<i32>} : memref<1x16x2x16x8xf32, #tpu.memory_space<vmem>>, vector<1x16x1x16x4xf32>,
    %43 = vector.extract_strided_slice %11 {offsets = [1, 0, 0], sizes = [16, 16, 4], strides = [1, 1, 1]} : vector<18x18x4xf32> to vector<16x16x4xf32>
    %44 = vector.extract_strided_slice %11 {offsets = [1, 1, 0], sizes = [16, 16, 4], strides = [1, 1, 1]} : vector<18x18x4xf32> to vector<16x16x4xf32>
    %45 = vector.extract_strided_slice %11 {offsets = [2, 0, 0], sizes = [16, 16, 4], strides = [1, 1, 1]} : vector<18x18x4xf32> to vector<16x16x4xf32>
    %46 = vector.extract_strided_slice %11 {offsets = [2, 1, 0], sizes = [16, 16, 4], strides = [1, 1, 1]} : vector<18x18x4xf32> to vector<16x16x4xf32>
    %47 = tpu.concatenate %43, %44, %45, %46 in 2 : vector<16x16x4xf32>, vector<16x16x4xf32>, vector<16x16x4xf32>, vector<16x16x4xf32> -> vector<16x16x16xf32>
    %48 = vector.shape_cast %47 : vector<16x16x16xf32> to vector<256x16xf32>
    %c2 = arith.constant 2 : index
    %c0_28 = arith.constant 0 : index
    %c0_29 = arith.constant 0 : index
    %49 = vector.load %arg5[%c2, %c0_28, %c0_29] : memref<4x16x4xf32, #tpu.memory_space<vmem>>, vector<1x16x4xf32>
    %50 = vector.shape_cast %49 : vector<1x16x4xf32> to vector<16x4xf32>
    %cst_30 = arith.constant dense<0.000000e+00> : vector<256x4xf32>
    %51 = tpu.matmul %48, %50, %cst_30 {dimension_numbers = #tpu.dot_dimension_numbers<[1], [0], [0], [1], [0, 0, 1, 1], [], []>} : vector<256x16xf32>, vector<16x4xf32>, vector<256x4xf32> -> vector<256x4xf32>
    %52 = vector.broadcast %12 : vector<1x4xf32> to vector<256x4xf32>
    %53 = arith.addf %51, %52 : vector<256x4xf32>
    %54 = vector.shape_cast %53 : vector<256x4xf32> to vector<16x16x4xf32>
    %c0_31 = arith.constant 0 : index
    %c0_32 = arith.constant 0 : index
    %c1_33 = arith.constant 1 : index
    %c0_34 = arith.constant 0 : index
    %c0_35 = arith.constant 0 : index
    %55 = vector.load %arg7[%c0_31, %c0_32, %c1_33, %c0_34, %c0_35] : memref<1x16x2x16x8xf32, #tpu.memory_space<vmem>>, vector<1x16x1x16x4xf32>
    %56 = vector.shape_cast %55 : vector<1x16x1x16x4xf32> to vector<16x16x4xf32>
    %57 = vector.shape_cast %54 : vector<16x16x4xf32> to vector<1x16x1x16x4xf32>
    tpu.vector_store %arg7[%c0_31, %c0_32, %c1_33, %c0_34, %c0_35], %57 {strides = array<i32>} : memref<1x16x2x16x8xf32, #tpu.memory_space<vmem>>, vector<1x16x1x16x4xf32>,
    %58 = vector.extract_strided_slice %11 {offsets = [1, 1, 0], sizes = [16, 16, 4], strides = [1, 1, 1]} : vector<18x18x4xf32> to vector<16x16x4xf32>
    %59 = vector.extract_strided_slice %11 {offsets = [1, 2, 0], sizes = [16, 16, 4], strides = [1, 1, 1]} : vector<18x18x4xf32> to vector<16x16x4xf32>
    %60 = vector.extract_strided_slice %11 {offsets = [2, 1, 0], sizes = [16, 16, 4], strides = [1, 1, 1]} : vector<18x18x4xf32> to vector<16x16x4xf32>
    %61 = vector.extract_strided_slice %11 {offsets = [2, 2, 0], sizes = [16, 16, 4], strides = [1, 1, 1]} : vector<18x18x4xf32> to vector<16x16x4xf32>
    %62 = tpu.concatenate %58, %59, %60, %61 in 2 : vector<16x16x4xf32>, vector<16x16x4xf32>, vector<16x16x4xf32>, vector<16x16x4xf32> -> vector<16x16x16xf32>
    %63 = vector.shape_cast %62 : vector<16x16x16xf32> to vector<256x16xf32>
    %c3 = arith.constant 3 : index
    %c0_36 = arith.constant 0 : index
    %c0_37 = arith.constant 0 : index
    %64 = vector.load %arg5[%c3, %c0_36, %c0_37] : memref<4x16x4xf32, #tpu.memory_space<vmem>>, vector<1x16x4xf32>
    %65 = vector.shape_cast %64 : vector<1x16x4xf32> to vector<16x4xf32>
    %cst_38 = arith.constant dense<0.000000e+00> : vector<256x4xf32>
    %66 = tpu.matmul %63, %65, %cst_38 {dimension_numbers = #tpu.dot_dimension_numbers<[1], [0], [0], [1], [0, 0, 1, 1], [], []>} : vector<256x16xf32>, vector<16x4xf32>, vector<256x4xf32> -> vector<256x4xf32>
    %67 = vector.broadcast %12 : vector<1x4xf32> to vector<256x4xf32>
    %68 = arith.addf %66, %67 : vector<256x4xf32>
    %69 = vector.shape_cast %68 : vector<256x4xf32> to vector<16x16x4xf32>
    %c0_39 = arith.constant 0 : index
    %c0_40 = arith.constant 0 : index
    %c1_41 = arith.constant 1 : index
    %c0_42 = arith.constant 0 : index
    %c4_43 = arith.constant 4 : index
    %70 = vector.load %arg7[%c0_39, %c0_40, %c1_41, %c0_42, %c4_43] : memref<1x16x2x16x8xf32, #tpu.memory_space<vmem>>, vector<1x16x1x16x4xf32>
    %71 = vector.shape_cast %70 : vector<1x16x1x16x4xf32> to vector<16x16x4xf32>
    %72 = vector.shape_cast %69 : vector<16x16x4xf32> to vector<1x16x1x16x4xf32>
    tpu.vector_store %arg7[%c0_39, %c0_40, %c1_41, %c0_42, %c4_43], %72 {strides = array<i32>} : memref<1x16x2x16x8xf32, #tpu.memory_space<vmem>>, vector<1x16x1x16x4xf32>,
    return
  }
  func.func @transform_0(%arg0: i32, %arg1: i32) -> (i32, i32, i32, i32) {
    %c0_i32 = arith.constant 0 : i32
    %c0_i32_0 = arith.constant 0 : i32
    %c0_i32_1 = arith.constant 0 : i32
    return %arg0, %arg1, %c0_i32, %c0_i32_0 : i32, i32, i32, i32
  }
  func.func @transform_1(%arg0: i32, %arg1: i32) -> (i32, i32, i32, i32) {
    %c0_i32 = arith.constant 0 : i32
    %c0_i32_0 = arith.constant 0 : i32
    %c0_i32_1 = arith.constant 0 : i32
    return %arg0, %arg1, %c0_i32, %c0_i32_0 : i32, i32, i32, i32
  }
  func.func @transform_2(%arg0: i32, %arg1: i32) -> (i32, i32, i32, i32) {
    %c0_i32 = arith.constant 0 : i32
    %c0_i32_0 = arith.constant 0 : i32
    %c0_i32_1 = arith.constant 0 : i32
    return %arg0, %arg1, %c0_i32, %c0_i32_0 : i32, i32, i32, i32
  }
  func.func @transform_3(%arg0: i32, %arg1: i32) -> (i32, i32, i32) {
    %c0_i32 = arith.constant 0 : i32
    %c0_i32_0 = arith.constant 0 : i32
    %c0_i32_1 = arith.constant 0 : i32
    %c0_i32_2 = arith.constant 0 : i32
    return %c0_i32, %c0_i32_0, %c0_i32_1 : i32, i32, i32
  }
  func.func @transform_4(%arg0: i32, %arg1: i32) -> (i32, i32) {
    %c0_i32 = arith.constant 0 : i32
    %c0_i32_0 = arith.constant 0 : i32
    %c0_i32_1 = arith.constant 0 : i32
    return %c0_i32, %c0_i32_0 : i32, i32
  }
  func.func @transform_5(%arg0: i32, %arg1: i32) -> (i32, i32, i32, i32, i32) {
    %c0_i32 = arith.constant 0 : i32
    %c0_i32_0 = arith.constant 0 : i32
    %c0_i32_1 = arith.constant 0 : i32
    %c0_i32_2 = arith.constant 0 : i32
    return %arg0, %arg1, %c0_i32, %c0_i32_0, %c0_i32_1 : i32, i32, i32, i32, i32
  }
}

</mosaic_0001>

<llo_original>
// kernel: tpu_custom_call.1
$region0: #{tpu_custom_call.1}
  #allocation0 [shape = 'u32[]', space=smem, size = 0x4, offset = 0x4, fixed_abs, tag = 'smem constant byte address 0x4 - core index']
  #allocation1 [shape = 'u32[144,128]{1,0:T(1,128)}', space=vmem, size = 0x12000, scoped, tag = 'internal scratch']
  %s0 = inlined_call_operand.vmem [shape: f32[2,16,16,4], index: 0, kind: input, shape index: {}]
  %s1 = inlined_call_operand.vmem [shape: f32[2,1,16,4], index: 1, kind: input, shape index: {}]
  %s2 = inlined_call_operand.vmem [shape: f32[2,1,16,4], index: 2, kind: input, shape index: {}]
  %s3 = inlined_call_operand.vmem [shape: f32[4,16,4], index: 3, kind: input, shape index: {}]
  %s4 = inlined_call_operand.vmem [shape: f32[1,4], index: 4, kind: input, shape index: {}]
  %s5 = inlined_call_operand.vmem [shape: f32[2,16,2,16,8], index: 5, kind: output, shape index: {}]
  %s6 = sld [smem:[#allocation0]]
  $region53: #{tpu_custom_call.1} parent=0
    _
  %s8 = ssub.s32 1, %s6
  %s9 = scalar_select 0, %s8, %s6
  loop: start=0, step=1, limit=4
  $region2: #{tpu_custom_call.1} parent=0 // loop_pre_header
    _
  $region3: #{tpu_custom_call.1} parent=0 // loop_header
    %s11 = sphi 0, %s15
    %p12 = scmp.ge.s32.totalorder %s11, 4
    %s18 = sphi 0, %s30
    %s19 = sphi 0, %s26
    %s20 = sphi 0, %s18
    %s21 = sphi 0, %s19
    %s22 = sphi 0, %s20
    %s23 = sphi 0, %s21
    %s35 = sphi 0, %s37
    %s38 = sphi 0, %s35
    %s39 = sphi 0, %s38
    %s55 = sphi 0, %s39
    %s63 = sphi 0, %s65
    %s66 = sphi 0, %s63
    %s67 = sphi 0, %s66
    %s83 = sphi 0, %s67
    %s91 = sphi 0, %s93
    %s94 = sphi 0, %s91
    %s95 = sphi 0, %s94
    %s111 = sphi 0, %s95
    %s115 = sphi 0, %s115
    %s117 = sphi 0, %s115
    %s118 = sphi 0, %s117
    %s132 = sphi 0, %s118
    %s136 = sphi 0, %s136
    %s138 = sphi 0, %s136
    %s139 = sphi 0, %s138
    %s153 = sphi 0, %s139
    %s161 = sphi 0, %s163
    %s164 = sphi 0, %s161
    %s165 = sphi 0, %s164
    %s181 = sphi 0, %s165
  $region4: #{tpu_custom_call.1} parent=0 // loop_header_branch
    %14 = sbr.rel (%p12) target = $region8
  $region5: #{tpu_custom_call.1} parent=0 // loop_body
    %s16 = ssub.s32 %s11, 1
    %s17 = ssub.s32 %s11, 2
    %s24 = sadd.s32 1, %s19
    %p25 = scmp.ge.s32.totalorder %s24, 1
    %s26 = scalar_select %p25, 0, %s24
    %s27 = sadd.s32 1, %s18
    %s28 = scalar_select %p25, %s27, %s18
    %p29 = scmp.ge.s32.totalorder %s28, 2
    %s30 = scalar_select %p29, 0, %s28
    %s31 = ssub.s32 %s18, %s30
    %s32 = ssub.s32 %s19, %s26
    %s33 = sor.u32 %s31, %s32
    %p34 = scmp.eq.s32.totalorder %s33, 0
    %s36 = sadd.s32 %s35, 1
    %s37 = scalar_select %p34, %s35, %s36
    %p40 = pneg %p34
    %p41 = scmp.eq.s32.totalorder %s11, 1
    %p42 = por %p40, %p41
    %p43 = scmp.ne.s32.totalorder %s35, %s38
    %p44 = scmp.eq.s32.totalorder %s11, 0
    %p45 = por %p43, %p44
    %p46 = scmp.ne.s32.totalorder %s35, %s38
    %p47 = scmp.eq.s32.totalorder %s16, 1
    %p48 = por %p46, %p47
    %p49 = scmp.ne.s32.totalorder %s38, %s39
    %p50 = scmp.eq.s32.totalorder %s16, 0
    %p51 = por %p49, %p50
    %p52 = scmp.ne.s32.totalorder %s38, %s39
    %p53 = scmp.eq.s32.totalorder %s17, 1
    %p54 = por %p52, %p53
    %p56 = scmp.ne.s32.totalorder %s39, %s55
    %p57 = scmp.eq.s32.totalorder %s17, 0
    %p58 = por %p56, %p57
    %s59 = ssub.s32 %s18, %s30
    %s60 = ssub.s32 %s19, %s26
    %s61 = sor.u32 %s59, %s60
    %p62 = scmp.eq.s32.totalorder %s61, 0
    %s64 = sadd.s32 %s63, 1
    %s65 = scalar_select %p62, %s63, %s64
    %p68 = pneg %p62
    %p69 = scmp.eq.s32.totalorder %s11, 1
    %p70 = por %p68, %p69
    %p71 = scmp.ne.s32.totalorder %s63, %s66
    %p72 = scmp.eq.s32.totalorder %s11, 0
    %p73 = por %p71, %p72
    %p74 = scmp.ne.s32.totalorder %s63, %s66
    %p75 = scmp.eq.s32.totalorder %s16, 1
    %p76 = por %p74, %p75
    %p77 = scmp.ne.s32.totalorder %s66, %s67
    %p78 = scmp.eq.s32.totalorder %s16, 0
    %p79 = por %p77, %p78
    %p80 = scmp.ne.s32.totalorder %s66, %s67
    %p81 = scmp.eq.s32.totalorder %s17, 1
    %p82 = por %p80, %p81
    %p84 = scmp.ne.s32.totalorder %s67, %s83
    %p85 = scmp.eq.s32.totalorder %s17, 0
    %p86 = por %p84, %p85
    %s87 = ssub.s32 %s18, %s30
    %s88 = ssub.s32 %s19, %s26
    %s89 = sor.u32 %s87, %s88
    %p90 = scmp.eq.s32.totalorder %s89, 0
    %s92 = sadd.s32 %s91, 1
    %s93 = scalar_select %p90, %s91, %s92
    %p96 = pneg %p90
    %p97 = scmp.eq.s32.totalorder %s11, 1
    %p98 = por %p96, %p97
    %p99 = scmp.ne.s32.totalorder %s91, %s94
    %p100 = scmp.eq.s32.totalorder %s11, 0
    %p101 = por %p99, %p100
    %p102 = scmp.ne.s32.totalorder %s91, %s94
    %p103 = scmp.eq.s32.totalorder %s16, 1
    %p104 = por %p102, %p103
    %p105 = scmp.ne.s32.totalorder %s94, %s95
    %p106 = scmp.eq.s32.totalorder %s16, 0
    %p107 = por %p105, %p106
    %p108 = scmp.ne.s32.totalorder %s94, %s95
    %p109 = scmp.eq.s32.totalorder %s17, 1
    %p110 = por %p108, %p109
    %p112 = scmp.ne.s32.totalorder %s95, %s111
    %p113 = scmp.eq.s32.totalorder %s17, 0
    %p114 = por %p112, %p113
    %s116 = sadd.s32 %s115, 1
    %p119 = scmp.eq.s32.totalorder %s11, 1
    %p120 = scmp.ne.s32.totalorder %s115, %s117
    %p121 = scmp.eq.s32.totalorder %s11, 0
    %p122 = por %p120, %p121
    %p123 = scmp.ne.s32.totalorder %s115, %s117
    %p124 = scmp.eq.s32.totalorder %s16, 1
    %p125 = por %p123, %p124
    %p126 = scmp.ne.s32.totalorder %s117, %s118
    %p127 = scmp.eq.s32.totalorder %s16, 0
    %p128 = por %p126, %p127
    %p129 = scmp.ne.s32.totalorder %s117, %s118
    %p130 = scmp.eq.s32.totalorder %s17, 1
    %p131 = por %p129, %p130
    %p133 = scmp.ne.s32.totalorder %s118, %s132
    %p134 = scmp.eq.s32.totalorder %s17, 0
    %p135 = por %p133, %p134
    %s137 = sadd.s32 %s136, 1
    %p140 = scmp.eq.s32.totalorder %s11, 1
    %p141 = scmp.ne.s32.totalorder %s136, %s138
    %p142 = scmp.eq.s32.totalorder %s11, 0
    %p143 = por %p141, %p142
    %p144 = scmp.ne.s32.totalorder %s136, %s138
    %p145 = scmp.eq.s32.totalorder %s16, 1
    %p146 = por %p144, %p145
    %p147 = scmp.ne.s32.totalorder %s138, %s139
    %p148 = scmp.eq.s32.totalorder %s16, 0
    %p149 = por %p147, %p148
    %p150 = scmp.ne.s32.totalorder %s138, %s139
    %p151 = scmp.eq.s32.totalorder %s17, 1
    %p152 = por %p150, %p151
    %p154 = scmp.ne.s32.totalorder %s139, %s153
    %p155 = scmp.eq.s32.totalorder %s17, 0
    %p156 = por %p154, %p155
    %s157 = ssub.s32 %s18, %s30
    %s158 = ssub.s32 %s19, %s26
    %s159 = sor.u32 %s157, %s158
    %p160 = scmp.eq.s32.totalorder %s159, 0
    %s162 = sadd.s32 %s161, 1
    %s163 = scalar_select %p160, %s161, %s162
    %p166 = pneg %p160
    %p167 = scmp.eq.s32.totalorder %s11, 1
    %p168 = por %p166, %p167
    %p169 = scmp.ne.s32.totalorder %s161, %s164
    %p170 = scmp.eq.s32.totalorder %s11, 0
    %p171 = por %p169, %p170
    %p172 = scmp.ne.s32.totalorder %s161, %s164
    %p173 = scmp.eq.s32.totalorder %s16, 1
    %p174 = por %p172, %p173
    %p175 = scmp.ne.s32.totalorder %s164, %s165
    %p176 = scmp.eq.s32.totalorder %s16, 0
    %p177 = por %p175, %p176
    %p178 = scmp.ne.s32.totalorder %s164, %s165
    %p179 = scmp.eq.s32.totalorder %s17, 1
    %p180 = por %p178, %p179
    %p182 = scmp.ne.s32.totalorder %s165, %s181
    %p183 = scmp.eq.s32.totalorder %s17, 0
    %p184 = por %p182, %p183
    %p185 = scmp.le.s32.totalorder 1, %s11
    %p186 = scmp.lt.s32.totalorder %s11, 3
    %p187 = pnand %p185, %p186
    %p188 = pneg %p187
    // Predicated region
    $region9: #{tpu_custom_call.1} parent=5 // pred_check
      _
    $region10: #{tpu_custom_call.1} parent=5 // pred_check_branch
      %190 = sbr.rel (%p187) target = $region12
    $region11: #{tpu_custom_call.1} parent=5 // pred_region
      %s191 = ssub.s32 %s11, 1
      // Predicated region
      $region13: #{tpu_custom_call.1} parent=11 // pred_check
        %p192 = pneg %p128
      $region14: #{tpu_custom_call.1} parent=11 // pred_check_branch
        %194 = sbr.rel (%p192) target = $region16
      $region15: #{tpu_custom_call.1} parent=11 // pred_region
        _
      $region16: #{tpu_custom_call.1} parent=11 // pred_fallthru
        _
      // Predicated region
      $region17: #{tpu_custom_call.1} parent=11 // pred_check
        %p195 = pneg %p149
      $region18: #{tpu_custom_call.1} parent=11 // pred_check_branch
        %197 = sbr.rel (%p195) target = $region20
      $region19: #{tpu_custom_call.1} parent=11 // pred_region
        _
      $region20: #{tpu_custom_call.1} parent=11 // pred_fallthru
        _
    $region12: #{tpu_custom_call.1} parent=5 // pred_fallthru
      _
    %p198 = scmp.lt.s32.totalorder %s11, 2
    // Predicated region
    $region21: #{tpu_custom_call.1} parent=5 // pred_check
      %p199 = pneg %p198
    $region22: #{tpu_custom_call.1} parent=5 // pred_check_branch
      %201 = sbr.rel (%p199) target = $region24
    $region23: #{tpu_custom_call.1} parent=5 // pred_region
      // Predicated region
      $region25: #{tpu_custom_call.1} parent=23 // pred_check
        %p202 = pneg %p45
      $region26: #{tpu_custom_call.1} parent=23 // pred_check_branch
        %204 = sbr.rel (%p202) target = $region28
      $region27: #{tpu_custom_call.1} parent=23 // pred_region
        %s205 = smul.u32 16, %s19
        %p206 = scmp.lt.s32.totalorder %s18, 1
        %s207 = scalar_select %p206, %s18, 1
        %p208 = scmp.lt.s32.totalorder %s205, 15
        %s209 = scalar_select %p208, %s205, 15
        %s210 = smul.addr %s209, 2
        %s211 = smul.addr %s207, 32
        %s212 = sadd.s32 %s210, %s211
        %s213 = smul.addr %s212, 8
        %s214 = scalar_lea.vmem %s0, %s213
        %s215 = smul.u32 16, %s19
      $region28: #{tpu_custom_call.1} parent=23 // pred_fallthru
        _
      // Predicated region
      $region29: #{tpu_custom_call.1} parent=23 // pred_check
        %p216 = pneg %p73
      $region30: #{tpu_custom_call.1} parent=23 // pred_check_branch
        %218 = sbr.rel (%p216) target = $region32
      $region31: #{tpu_custom_call.1} parent=23 // pred_region
        %p219 = scmp.lt.s32.totalorder %s18, 1
        %s220 = scalar_select %p219, %s18, 1
        %p221 = scmp.lt.s32.totalorder %s19, 0
        %s222 = scalar_select %p221, %s19, 0
        %s223 = smul.addr %s222, 2
        %s224 = smul.addr %s220, 2
        %s225 = sadd.s32 %s223, %s224
        %s226 = smul.addr %s225, 8
        %s227 = scalar_lea.vmem %s1, %s226
      $region32: #{tpu_custom_call.1} parent=23 // pred_fallthru
        _
      // Predicated region
      $region33: #{tpu_custom_call.1} parent=23 // pred_check
        %p228 = pneg %p101
      $region34: #{tpu_custom_call.1} parent=23 // pred_check_branch
        %230 = sbr.rel (%p228) target = $region36
      $region35: #{tpu_custom_call.1} parent=23 // pred_region
        %p231 = scmp.lt.s32.totalorder %s18, 1
        %s232 = scalar_select %p231, %s18, 1
        %p233 = scmp.lt.s32.totalorder %s19, 0
        %s234 = scalar_select %p233, %s19, 0
        %s235 = smul.addr %s234, 2
        %s236 = smul.addr %s232, 2
        %s237 = sadd.s32 %s235, %s236
        %s238 = smul.addr %s237, 8
        %s239 = scalar_lea.vmem %s2, %s238
      $region36: #{tpu_custom_call.1} parent=23 // pred_fallthru
        _
    $region24: #{tpu_custom_call.1} parent=5 // pred_fallthru
      _
    %p240 = scmp.le.s32.totalorder 1, %s11
    %p241 = scmp.lt.s32.totalorder %s11, 3
    %p242 = pnand %p240, %p241
    %p243 = pneg %p242
    // Predicated region
    $region37: #{tpu_custom_call.1} parent=5 // pred_check
      _
    $region38: #{tpu_custom_call.1} parent=5 // pred_check_branch
      %245 = sbr.rel (%p242) target = $region40
    $region39: #{tpu_custom_call.1} parent=5 // pred_region
      %s246 = ssub.s32 %s11, 1
      %s247 = smul.u32 16, %s21
      %p248 = scmp.lt.s32.totalorder %s20, 1
      %s249 = scalar_select %p248, %s20, 1
      %p250 = scmp.lt.s32.totalorder %s247, 15
      %s251 = scalar_select %p250, %s247, 15
      %s252 = smul.addr %s251, 2
      %s253 = smul.addr %s249, 32
      %s254 = sadd.s32 %s252, %s253
      %s255 = smul.addr %s254, 8
      %s256 = scalar_lea.vmem %s0, %s255
      %p257 = pneg %p51
      %p258 = pneg %p48
      %p259 = scmp.lt.s32.totalorder %s20, 1
      %s260 = scalar_select %p259, %s20, 1
      %p261 = scmp.lt.s32.totalorder %s21, 0
      %s262 = scalar_select %p261, %s21, 0
      %s263 = smul.addr %s262, 2
      %s264 = smul.addr %s260, 2
      %s265 = sadd.s32 %s263, %s264
      %s266 = smul.addr %s265, 8
      %s267 = scalar_lea.vmem %s1, %s266
      %p268 = pneg %p79
      %p269 = pneg %p76
      %p270 = scmp.lt.s32.totalorder %s20, 1
      %s271 = scalar_select %p270, %s20, 1
      %p272 = scmp.lt.s32.totalorder %s21, 0
      %s273 = scalar_select %p272, %s21, 0
      %s274 = smul.addr %s273, 2
      %s275 = smul.addr %s271, 2
      %s276 = sadd.s32 %s274, %s275
      %s277 = smul.addr %s276, 8
      %s278 = scalar_lea.vmem %s2, %s277
      %p279 = pneg %p107
      %p280 = pneg %p104
      %p281 = pneg %p128
      %p282 = pneg %p125
      %p283 = pneg %p149
      %p284 = pneg %p146
      %p285 = pneg %p177
      %p286 = pneg %p174
      %s287 = smul.u32 16, %s21
      %p288 = scmp.lt.s32.totalorder %s20, 1
      %s289 = scalar_select %p288, %s20, 1
      %p290 = scmp.lt.s32.totalorder %s287, 15
      %s291 = scalar_select %p290, %s287, 15
      %s292 = smul.addr %s291, 4
      %s293 = smul.addr %s289, 64
      %s294 = sadd.s32 %s292, %s293
      %s295 = smul.addr %s294, 8
      %s296 = scalar_lea.vmem %s5, %s295
      %s297 = smul.u32 16, %s21
      %p298 = scmp.lt.s32.totalorder %s20, 1
      %s299 = scalar_select %p298, %s20, 1
      %p300 = scmp.lt.s32.totalorder %s297, 15
      %s301 = scalar_select %p300, %s297, 15
      %s302 = smul.addr %s301, 2
      %s303 = smul.addr %s299, 32
      %s304 = sadd.s32 %s302, %s303
      %s305 = smul.addr %s304, 8
      %s306 = scalar_lea.vmem %s0, %s305
      %s307 = smul.u32 16, %s21
      %p308 = scmp.lt.s32.totalorder %s20, 1
      %s309 = scalar_select %p308, %s20, 1
      %p310 = scmp.lt.s32.totalorder %s21, 0
      %s311 = scalar_select %p310, %s21, 0
      %s312 = smul.addr %s311, 2
      %s313 = smul.addr %s309, 2
      %s314 = sadd.s32 %s312, %s313
      %s315 = smul.addr %s314, 8
      %s316 = scalar_lea.vmem %s1, %s315
      %p317 = scmp.lt.s32.totalorder %s20, 1
      %s318 = scalar_select %p317, %s20, 1
      %p319 = scmp.lt.s32.totalorder %s21, 0
      %s320 = scalar_select %p319, %s21, 0
      %s321 = smul.addr %s320, 2
      %s322 = smul.addr %s318, 2
      %s323 = sadd.s32 %s321, %s322
      %s324 = smul.addr %s323, 8
      %s325 = scalar_lea.vmem %s2, %s324
      %s326 = smul.u32 16, %s21
      %p327 = scmp.lt.s32.totalorder %s20, 1
      %s328 = scalar_select %p327, %s20, 1
      %p329 = scmp.lt.s32.totalorder %s326, 15
      %s330 = scalar_select %p329, %s326, 15
      %s331 = smul.addr %s330, 4
      %s332 = smul.addr %s328, 64
      %s333 = sadd.s32 %s331, %s332
      %s334 = smul.addr %s333, 8
      %s335 = scalar_lea.vmem %s5, %s334
      %s336 = smul.u32 16, %s21
      %v337 = vld [vmem:[%s316] sm:$0xff]
      %v338 = vld [vmem:[%s316 + $0x8] sm:$0xff]
      %v339 = vld [vmem:[%s306] sm:$0xff]
      %v340 = vld [vmem:[%s306 + $0x8] sm:$0xff]
      %v341 = vld [vmem:[%s306 + $0x10] sm:$0xff]
      %v342 = vld [vmem:[%s306 + $0x18] sm:$0xff]
      %v343 = vld [vmem:[%s306 + $0x20] sm:$0xff]
      %v344 = vld [vmem:[%s306 + $0x28] sm:$0xff]
      %v345 = vld [vmem:[%s306 + $0x30] sm:$0xff]
      %v346 = vld [vmem:[%s306 + $0x38] sm:$0xff]
      %v347 = vld [vmem:[%s306 + $0x40] sm:$0xff]
      %v348 = vld [vmem:[%s306 + $0x48] sm:$0xff]
      %v349 = vld [vmem:[%s306 + $0x50] sm:$0xff]
      %v350 = vld [vmem:[%s306 + $0x58] sm:$0xff]
      %v351 = vld [vmem:[%s306 + $0x60] sm:$0xff]
      %v352 = vld [vmem:[%s306 + $0x68] sm:$0xff]
      %v353 = vld [vmem:[%s306 + $0x70] sm:$0xff]
      %v354 = vld [vmem:[%s306 + $0x78] sm:$0xff]
      %v355 = vld [vmem:[%s306 + $0x80] sm:$0xff]
      %v356 = vld [vmem:[%s306 + $0x88] sm:$0xff]
      %v357 = vld [vmem:[%s306 + $0x90] sm:$0xff]
      %v358 = vld [vmem:[%s306 + $0x98] sm:$0xff]
      %v359 = vld [vmem:[%s306 + $0xa0] sm:$0xff]
      %v360 = vld [vmem:[%s306 + $0xa8] sm:$0xff]
      %v361 = vld [vmem:[%s306 + $0xb0] sm:$0xff]
      %v362 = vld [vmem:[%s306 + $0xb8] sm:$0xff]
      %v363 = vld [vmem:[%s306 + $0xc0] sm:$0xff]
      %v364 = vld [vmem:[%s306 + $0xc8] sm:$0xff]
      %v365 = vld [vmem:[%s306 + $0xd0] sm:$0xff]
      %v366 = vld [vmem:[%s306 + $0xd8] sm:$0xff]
      %v367 = vld [vmem:[%s306 + $0xe0] sm:$0xff]
      %v368 = vld [vmem:[%s306 + $0xe8] sm:$0xff]
      %v369 = vld [vmem:[%s306 + $0xf0] sm:$0xff]
      %v370 = vld [vmem:[%s306 + $0xf8] sm:$0xff]
      %v371 = vld [vmem:[%s325] sm:$0xff]
      %v372 = vld [vmem:[%s325 + $0x8] sm:$0xff]
      %vm409 = vcmask 1040384
      %v410 = vrot.slane %v337, 7
      %v411 = vrot.slane %v338, 7
      %v412 = vsel %vm409, %v410, %v411
      %v413 = vrot.slane %v339, 7
      %v414 = vrot.slane %v340, 7
      %v415 = vsel %vm409, %v413, %v414
      %v416 = vrot.slane %v341, 7
      %v417 = vrot.slane %v342, 7
      %v418 = vsel %vm409, %v416, %v417
      %v419 = vrot.slane %v343, 7
      %v420 = vrot.slane %v344, 7
      %v421 = vsel %vm409, %v419, %v420
      %v422 = vrot.slane %v345, 7
      %v423 = vrot.slane %v346, 7
      %v424 = vsel %vm409, %v422, %v423
      %v425 = vrot.slane %v347, 7
      %v426 = vrot.slane %v348, 7
      %v427 = vsel %vm409, %v425, %v426
      %v428 = vrot.slane %v349, 7
      %v429 = vrot.slane %v350, 7
      %v430 = vsel %vm409, %v428, %v429
      %v431 = vrot.slane %v351, 7
      %v432 = vrot.slane %v352, 7
      %v433 = vsel %vm409, %v431, %v432
      %v434 = vrot.slane %v353, 7
      %v435 = vrot.slane %v354, 7
      %v436 = vsel %vm409, %v434, %v435
      %v437 = vrot.slane %v355, 7
      %v438 = vrot.slane %v356, 7
      %v439 = vsel %vm409, %v437, %v438
      %v440 = vrot.slane %v357, 7
      %v441 = vrot.slane %v358, 7
      %v442 = vsel %vm409, %v440, %v441
      %v443 = vrot.slane %v359, 7
      %v444 = vrot.slane %v360, 7
      %v445 = vsel %vm409, %v443, %v444
      %v446 = vrot.slane %v361, 7
      %v447 = vrot.slane %v362, 7
      %v448 = vsel %vm409, %v446, %v447
      %v449 = vrot.slane %v363, 7
      %v450 = vrot.slane %v364, 7
      %v451 = vsel %vm409, %v449, %v450
      %v452 = vrot.slane %v365, 7
      %v453 = vrot.slane %v366, 7
      %v454 = vsel %vm409, %v452, %v453
      %v455 = vrot.slane %v367, 7
      %v456 = vrot.slane %v368, 7
      %v457 = vsel %vm409, %v455, %v456
      %v458 = vrot.slane %v369, 7
      %v459 = vrot.slane %v370, 7
      %v460 = vsel %vm409, %v458, %v459
      %v461 = vrot.slane %v371, 7
      %v462 = vrot.slane %v372, 7
      %v463 = vsel %vm409, %v461, %v462
      %v517 = vsel %vm409, 0.0, %v410
      %v518 = vsel %vm409, 0.0, %v413
      %v519 = vsel %vm409, 0.0, %v416
      %v520 = vsel %vm409, 0.0, %v419
      %v521 = vsel %vm409, 0.0, %v422
      %v522 = vsel %vm409, 0.0, %v425
      %v523 = vsel %vm409, 0.0, %v428
      %v524 = vsel %vm409, 0.0, %v431
      %v525 = vsel %vm409, 0.0, %v434
      %v526 = vsel %vm409, 0.0, %v437
      %v527 = vsel %vm409, 0.0, %v440
      %v528 = vsel %vm409, 0.0, %v443
      %v529 = vsel %vm409, 0.0, %v446
      %v530 = vsel %vm409, 0.0, %v449
      %v531 = vsel %vm409, 0.0, %v452
      %v532 = vsel %vm409, 0.0, %v455
      %v533 = vsel %vm409, 0.0, %v458
      %v534 = vsel %vm409, 0.0, %v461
      %v535 = vsel %vm409, %v411, 0.0
      %v536 = vsel %vm409, %v414, 0.0
      %v537 = vsel %vm409, %v417, 0.0
      %v538 = vsel %vm409, %v420, 0.0
      %v539 = vsel %vm409, %v423, 0.0
      %v540 = vsel %vm409, %v426, 0.0
      %v541 = vsel %vm409, %v429, 0.0
      %v542 = vsel %vm409, %v432, 0.0
      %v543 = vsel %vm409, %v435, 0.0
      %v544 = vsel %vm409, %v438, 0.0
      %v545 = vsel %vm409, %v441, 0.0
      %v546 = vsel %vm409, %v444, 0.0
      %v547 = vsel %vm409, %v447, 0.0
      %v548 = vsel %vm409, %v450, 0.0
      %v549 = vsel %vm409, %v453, 0.0
      %v550 = vsel %vm409, %v456, 0.0
      %v551 = vsel %vm409, %v459, 0.0
      %v552 = vsel %vm409, %v462, 0.0
      %v553 = vld [vmem:[%s4] sm:$0x1]
      %vm586 = vcmask 1046528
      %v587 = vrot.slane %v517, 1
      %v588 = vrot.slane %v412, 1
      %v589 = vsel %vm586, %v587, %v588
      %v590 = vrot.slane %v535, 1
      %v591 = vsel %vm586, %v588, %v590
      %v592 = vrot.slane %v518, 1
      %v593 = vrot.slane %v415, 1
      %v594 = vsel %vm586, %v592, %v593
      %v595 = vrot.slane %v536, 1
      %v596 = vsel %vm586, %v593, %v595
      %v597 = vrot.slane %v519, 1
      %v598 = vrot.slane %v418, 1
      %v599 = vsel %vm586, %v597, %v598
      %v600 = vrot.slane %v537, 1
      %v601 = vsel %vm586, %v598, %v600
      %v602 = vrot.slane %v520, 1
      %v603 = vrot.slane %v421, 1
      %v604 = vsel %vm586, %v602, %v603
      %v605 = vrot.slane %v538, 1
      %v606 = vsel %vm586, %v603, %v605
      %v607 = vrot.slane %v521, 1
      %v608 = vrot.slane %v424, 1
      %v609 = vsel %vm586, %v607, %v608
      %v610 = vrot.slane %v539, 1
      %v611 = vsel %vm586, %v608, %v610
      %v612 = vrot.slane %v522, 1
      %v613 = vrot.slane %v427, 1
      %v614 = vsel %vm586, %v612, %v613
      %v615 = vrot.slane %v540, 1
      %v616 = vsel %vm586, %v613, %v615
      %v617 = vrot.slane %v523, 1
      %v618 = vrot.slane %v430, 1
      %v619 = vsel %vm586, %v617, %v618
      %v620 = vrot.slane %v541, 1
      %v621 = vsel %vm586, %v618, %v620
      %v622 = vrot.slane %v524, 1
      %v623 = vrot.slane %v433, 1
      %v624 = vsel %vm586, %v622, %v623
      %v625 = vrot.slane %v542, 1
      %v626 = vsel %vm586, %v623, %v625
      %v627 = vrot.slane %v525, 1
      %v628 = vrot.slane %v436, 1
      %v629 = vsel %vm586, %v627, %v628
      %v630 = vrot.slane %v543, 1
      %v631 = vsel %vm586, %v628, %v630
      %v632 = vrot.slane %v526, 1
      %v633 = vrot.slane %v439, 1
      %v634 = vsel %vm586, %v632, %v633
      %v635 = vrot.slane %v544, 1
      %v636 = vsel %vm586, %v633, %v635
      %v637 = vrot.slane %v527, 1
      %v638 = vrot.slane %v442, 1
      %v639 = vsel %vm586, %v637, %v638
      %v640 = vrot.slane %v545, 1
      %v641 = vsel %vm586, %v638, %v640
      %v642 = vrot.slane %v528, 1
      %v643 = vrot.slane %v445, 1
      %v644 = vsel %vm586, %v642, %v643
      %v645 = vrot.slane %v546, 1
      %v646 = vsel %vm586, %v643, %v645
      %v647 = vrot.slane %v529, 1
      %v648 = vrot.slane %v448, 1
      %v649 = vsel %vm586, %v647, %v648
      %v650 = vrot.slane %v547, 1
      %v651 = vsel %vm586, %v648, %v650
      %v652 = vrot.slane %v530, 1
      %v653 = vrot.slane %v451, 1
      %v654 = vsel %vm586, %v652, %v653
      %v655 = vrot.slane %v548, 1
      %v656 = vsel %vm586, %v653, %v655
      %v657 = vrot.slane %v531, 1
      %v658 = vrot.slane %v454, 1
      %v659 = vsel %vm586, %v657, %v658
      %v660 = vrot.slane %v549, 1
      %v661 = vsel %vm586, %v658, %v660
      %v662 = vrot.slane %v532, 1
      %v663 = vrot.slane %v457, 1
      %v664 = vsel %vm586, %v662, %v663
      %v665 = vrot.slane %v550, 1
      %v666 = vsel %vm586, %v663, %v665
      %667 = vrot.lane.b32.xlu0 %v589, 4
      %v668 = vpop.permute.xlu0 %667
      %669 = vrot.lane.b32.xlu0 %v591, 4
      %v670 = vpop.permute.xlu0 %669
      %671 = vrot.lane.b32.xlu0 %v594, 4
      %v672 = vpop.permute.xlu0 %671
      %673 = vrot.lane.b32.xlu0 %v596, 4
      %v674 = vpop.permute.xlu0 %673
      %675 = vrot.lane.b32.xlu0 %v599, 4
      %v676 = vpop.permute.xlu0 %675
      %677 = vrot.lane.b32.xlu0 %v601, 4
      %v678 = vpop.permute.xlu0 %677
      %679 = vrot.lane.b32.xlu0 %v604, 4
      %v680 = vpop.permute.xlu0 %679
      %681 = vrot.lane.b32.xlu0 %v606, 4
      %v682 = vpop.permute.xlu0 %681
      %683 = vrot.lane.b32.xlu0 %v609, 4
      %v684 = vpop.permute.xlu0 %683
      %685 = vrot.lane.b32.xlu0 %v611, 4
      %v686 = vpop.permute.xlu0 %685
      %687 = vrot.lane.b32.xlu0 %v614, 4
      %v688 = vpop.permute.xlu0 %687
      %689 = vrot.lane.b32.xlu0 %v616, 4
      %v690 = vpop.permute.xlu0 %689
      %691 = vrot.lane.b32.xlu0 %v619, 4
      %v692 = vpop.permute.xlu0 %691
      %693 = vrot.lane.b32.xlu0 %v621, 4
      %v694 = vpop.permute.xlu0 %693
      %695 = vrot.lane.b32.xlu0 %v624, 4
      %v696 = vpop.permute.xlu0 %695
      %697 = vrot.lane.b32.xlu0 %v626, 4
      %v698 = vpop.permute.xlu0 %697
      %699 = vrot.lane.b32.xlu0 %v629, 4
      %v700 = vpop.permute.xlu0 %699
      %701 = vrot.lane.b32.xlu0 %v631, 4
      %v702 = vpop.permute.xlu0 %701
      %703 = vrot.lane.b32.xlu0 %v634, 4
      %v704 = vpop.permute.xlu0 %703
      %705 = vrot.lane.b32.xlu0 %v636, 4
      %v706 = vpop.permute.xlu0 %705
      %707 = vrot.lane.b32.xlu0 %v639, 4
      %v708 = vpop.permute.xlu0 %707
      %709 = vrot.lane.b32.xlu0 %v641, 4
      %v710 = vpop.permute.xlu0 %709
      %711 = vrot.lane.b32.xlu0 %v644, 4
      %v712 = vpop.permute.xlu0 %711
      %713 = vrot.lane.b32.xlu0 %v646, 4
      %v714 = vpop.permute.xlu0 %713
      %715 = vrot.lane.b32.xlu0 %v649, 4
      %v716 = vpop.permute.xlu0 %715
      %717 = vrot.lane.b32.xlu0 %v651, 4
      %v718 = vpop.permute.xlu0 %717
      %719 = vrot.lane.b32.xlu0 %v654, 4
      %v720 = vpop.permute.xlu0 %719
      %721 = vrot.lane.b32.xlu0 %v656, 4
      %v722 = vpop.permute.xlu0 %721
      %723 = vrot.lane.b32.xlu0 %v659, 4
      %v724 = vpop.permute.xlu0 %723
      %725 = vrot.lane.b32.xlu0 %v661, 4
      %v726 = vpop.permute.xlu0 %725
      %727 = vrot.lane.b32.xlu0 %v664, 4
      %v728 = vpop.permute.xlu0 %727
      %729 = vrot.lane.b32.xlu0 %v666, 4
      %v730 = vpop.permute.xlu0 %729
      %764 = vrot.lane.b32.xlu0 %v518, 8
      %v765 = vpop.permute.xlu0 %764
      %766 = vrot.lane.b32.xlu0 %v415, 8
      %v767 = vpop.permute.xlu0 %766
      %768 = vrot.lane.b32.xlu0 %v519, 8
      %v769 = vpop.permute.xlu0 %768
      %770 = vrot.lane.b32.xlu0 %v418, 8
      %v771 = vpop.permute.xlu0 %770
      %772 = vrot.lane.b32.xlu0 %v520, 8
      %v773 = vpop.permute.xlu0 %772
      %774 = vrot.lane.b32.xlu0 %v421, 8
      %v775 = vpop.permute.xlu0 %774
      %776 = vrot.lane.b32.xlu0 %v521, 8
      %v777 = vpop.permute.xlu0 %776
      %778 = vrot.lane.b32.xlu0 %v424, 8
      %v779 = vpop.permute.xlu0 %778
      %780 = vrot.lane.b32.xlu0 %v522, 8
      %v781 = vpop.permute.xlu0 %780
      %782 = vrot.lane.b32.xlu0 %v427, 8
      %v783 = vpop.permute.xlu0 %782
      %784 = vrot.lane.b32.xlu0 %v523, 8
      %v785 = vpop.permute.xlu0 %784
      %786 = vrot.lane.b32.xlu0 %v430, 8
      %v787 = vpop.permute.xlu0 %786
      %788 = vrot.lane.b32.xlu0 %v524, 8
      %v789 = vpop.permute.xlu0 %788
      %790 = vrot.lane.b32.xlu0 %v433, 8
      %v791 = vpop.permute.xlu0 %790
      %792 = vrot.lane.b32.xlu0 %v525, 8
      %v793 = vpop.permute.xlu0 %792
      %794 = vrot.lane.b32.xlu0 %v436, 8
      %v795 = vpop.permute.xlu0 %794
      %796 = vrot.lane.b32.xlu0 %v526, 8
      %v797 = vpop.permute.xlu0 %796
      %798 = vrot.lane.b32.xlu0 %v439, 8
      %v799 = vpop.permute.xlu0 %798
      %800 = vrot.lane.b32.xlu0 %v527, 8
      %v801 = vpop.permute.xlu0 %800
      %802 = vrot.lane.b32.xlu0 %v442, 8
      %v803 = vpop.permute.xlu0 %802
      %804 = vrot.lane.b32.xlu0 %v528, 8
      %v805 = vpop.permute.xlu0 %804
      %806 = vrot.lane.b32.xlu0 %v445, 8
      %v807 = vpop.permute.xlu0 %806
      %808 = vrot.lane.b32.xlu0 %v529, 8
      %v809 = vpop.permute.xlu0 %808
      %810 = vrot.lane.b32.xlu0 %v448, 8
      %v811 = vpop.permute.xlu0 %810
      %812 = vrot.lane.b32.xlu0 %v530, 8
      %v813 = vpop.permute.xlu0 %812
      %814 = vrot.lane.b32.xlu0 %v451, 8
      %v815 = vpop.permute.xlu0 %814
      %816 = vrot.lane.b32.xlu0 %v531, 8
      %v817 = vpop.permute.xlu0 %816
      %818 = vrot.lane.b32.xlu0 %v454, 8
      %v819 = vpop.permute.xlu0 %818
      %820 = vrot.lane.b32.xlu0 %v532, 8
      %v821 = vpop.permute.xlu0 %820
      %822 = vrot.lane.b32.xlu0 %v457, 8
      %v823 = vpop.permute.xlu0 %822
      %824 = vrot.lane.b32.xlu0 %v533, 8
      %v825 = vpop.permute.xlu0 %824
      %826 = vrot.lane.b32.xlu0 %v460, 8
      %v827 = vpop.permute.xlu0 %826
      %v861 = vrot.slane %v533, 1
      %v862 = vrot.slane %v460, 1
      %v863 = vsel %vm586, %v861, %v862
      %v864 = vrot.slane %v551, 1
      %v865 = vsel %vm586, %v862, %v864
      %866 = vrot.lane.b32.xlu0 %v594, 12
      %v867 = vpop.permute.xlu0 %866
      %868 = vrot.lane.b32.xlu0 %v596, 12
      %v869 = vpop.permute.xlu0 %868
      %870 = vrot.lane.b32.xlu0 %v599, 12
      %v871 = vpop.permute.xlu0 %870
      %872 = vrot.lane.b32.xlu0 %v601, 12
      %v873 = vpop.permute.xlu0 %872
      %874 = vrot.lane.b32.xlu0 %v604, 12
      %v875 = vpop.permute.xlu0 %874
      %876 = vrot.lane.b32.xlu0 %v606, 12
      %v877 = vpop.permute.xlu0 %876
      %878 = vrot.lane.b32.xlu0 %v609, 12
      %v879 = vpop.permute.xlu0 %878
      %880 = vrot.lane.b32.xlu0 %v611, 12
      %v881 = vpop.permute.xlu0 %880
      %882 = vrot.lane.b32.xlu0 %v614, 12
      %v883 = vpop.permute.xlu0 %882
      %884 = vrot.lane.b32.xlu0 %v616, 12
      %v885 = vpop.permute.xlu0 %884
      %886 = vrot.lane.b32.xlu0 %v619, 12
      %v887 = vpop.permute.xlu0 %886
      %888 = vrot.lane.b32.xlu0 %v621, 12
      %v889 = vpop.permute.xlu0 %888
      %890 = vrot.lane.b32.xlu0 %v624, 12
      %v891 = vpop.permute.xlu0 %890
      %892 = vrot.lane.b32.xlu0 %v626, 12
      %v893 = vpop.permute.xlu0 %892
      %894 = vrot.lane.b32.xlu0 %v629, 12
      %v895 = vpop.permute.xlu0 %894
      %896 = vrot.lane.b32.xlu0 %v631, 12
      %v897 = vpop.permute.xlu0 %896
      %898 = vrot.lane.b32.xlu0 %v634, 12
      %v899 = vpop.permute.xlu0 %898
      %900 = vrot.lane.b32.xlu0 %v636, 12
      %v901 = vpop.permute.xlu0 %900
      %902 = vrot.lane.b32.xlu0 %v639, 12
      %v903 = vpop.permute.xlu0 %902
      %904 = vrot.lane.b32.xlu0 %v641, 12
      %v905 = vpop.permute.xlu0 %904
      %906 = vrot.lane.b32.xlu0 %v644, 12
      %v907 = vpop.permute.xlu0 %906
      %908 = vrot.lane.b32.xlu0 %v646, 12
      %v909 = vpop.permute.xlu0 %908
      %910 = vrot.lane.b32.xlu0 %v649, 12
      %v911 = vpop.permute.xlu0 %910
      %912 = vrot.lane.b32.xlu0 %v651, 12
      %v913 = vpop.permute.xlu0 %912
      %914 = vrot.lane.b32.xlu0 %v654, 12
      %v915 = vpop.permute.xlu0 %914
      %916 = vrot.lane.b32.xlu0 %v656, 12
      %v917 = vpop.permute.xlu0 %916
      %918 = vrot.lane.b32.xlu0 %v659, 12
      %v919 = vpop.permute.xlu0 %918
      %920 = vrot.lane.b32.xlu0 %v661, 12
      %v921 = vpop.permute.xlu0 %920
      %922 = vrot.lane.b32.xlu0 %v664, 12
      %v923 = vpop.permute.xlu0 %922
      %924 = vrot.lane.b32.xlu0 %v666, 12
      %v925 = vpop.permute.xlu0 %924
      %926 = vrot.lane.b32.xlu0 %v863, 12
      %v927 = vpop.permute.xlu0 %926
      %928 = vrot.lane.b32.xlu0 %v865, 12
      %v929 = vpop.permute.xlu0 %928
      %vm962 = vcmask 31744
      %v963 = vsel %vm962, %v517, %v668
      %v964 = vsel %vm962, %v412, %v670
      %v965 = vsel %vm962, %v518, %v672
      %v966 = vsel %vm962, %v415, %v674
      %v967 = vsel %vm962, %v519, %v676
      %v968 = vsel %vm962, %v418, %v678
      %v969 = vsel %vm962, %v520, %v680
      %v970 = vsel %vm962, %v421, %v682
      %v971 = vsel %vm962, %v521, %v684
      %v972 = vsel %vm962, %v424, %v686
      %v973 = vsel %vm962, %v522, %v688
      %v974 = vsel %vm962, %v427, %v690
      %v975 = vsel %vm962, %v523, %v692
      %v976 = vsel %vm962, %v430, %v694
      %v977 = vsel %vm962, %v524, %v696
      %v978 = vsel %vm962, %v433, %v698
      %v979 = vsel %vm962, %v525, %v700
      %v980 = vsel %vm962, %v436, %v702
      %v981 = vsel %vm962, %v526, %v704
      %v982 = vsel %vm962, %v439, %v706
      %v983 = vsel %vm962, %v527, %v708
      %v984 = vsel %vm962, %v442, %v710
      %v985 = vsel %vm962, %v528, %v712
      %v986 = vsel %vm962, %v445, %v714
      %v987 = vsel %vm962, %v529, %v716
      %v988 = vsel %vm962, %v448, %v718
      %v989 = vsel %vm962, %v530, %v720
      %v990 = vsel %vm962, %v451, %v722
      %v991 = vsel %vm962, %v531, %v724
      %v992 = vsel %vm962, %v454, %v726
      %v993 = vsel %vm962, %v532, %v728
      %v994 = vsel %vm962, %v457, %v730
      %vm995 = vcmask 64512
      %v996 = vsel %vm995, %v963, %v765
      %v997 = vsel %vm995, %v964, %v767
      %v998 = vsel %vm995, %v965, %v769
      %v999 = vsel %vm995, %v966, %v771
      %v1000 = vsel %vm995, %v967, %v773
      %v1001 = vsel %vm995, %v968, %v775
      %v1002 = vsel %vm995, %v969, %v777
      %v1003 = vsel %vm995, %v970, %v779
      %v1004 = vsel %vm995, %v971, %v781
      %v1005 = vsel %vm995, %v972, %v783
      %v1006 = vsel %vm995, %v973, %v785
      %v1007 = vsel %vm995, %v974, %v787
      %v1008 = vsel %vm995, %v975, %v789
      %v1009 = vsel %vm995, %v976, %v791
      %v1010 = vsel %vm995, %v977, %v793
      %v1011 = vsel %vm995, %v978, %v795
      %v1012 = vsel %vm995, %v979, %v797
      %v1013 = vsel %vm995, %v980, %v799
      %v1014 = vsel %vm995, %v981, %v801
      %v1015 = vsel %vm995, %v982, %v803
      %v1016 = vsel %vm995, %v983, %v805
      %v1017 = vsel %vm995, %v984, %v807
      %v1018 = vsel %vm995, %v985, %v809
      %v1019 = vsel %vm995, %v986, %v811
      %v1020 = vsel %vm995, %v987, %v813
      %v1021 = vsel %vm995, %v988, %v815
      %v1022 = vsel %vm995, %v989, %v817
      %v1023 = vsel %vm995, %v990, %v819
      %v1024 = vsel %vm995, %v991, %v821
      %v1025 = vsel %vm995, %v992, %v823
      %v1026 = vsel %vm995, %v993, %v825
      %v1027 = vsel %vm995, %v994, %v827
      %vm1028 = vcmask 97280
      %v1029 = vsel %vm1028, %v996, %v867
      %v1030 = vsel %vm1028, %v997, %v869
      %v1031 = vsel %vm1028, %v998, %v871
      %v1032 = vsel %vm1028, %v999, %v873
      %v1033 = vsel %vm1028, %v1000, %v875
      %v1034 = vsel %vm1028, %v1001, %v877
      %v1035 = vsel %vm1028, %v1002, %v879
      %v1036 = vsel %vm1028, %v1003, %v881
      %v1037 = vsel %vm1028, %v1004, %v883
      %v1038 = vsel %vm1028, %v1005, %v885
      %v1039 = vsel %vm1028, %v1006, %v887
      %v1040 = vsel %vm1028, %v1007, %v889
      %v1041 = vsel %vm1028, %v1008, %v891
      %v1042 = vsel %vm1028, %v1009, %v893
      %v1043 = vsel %vm1028, %v1010, %v895
      %v1044 = vsel %vm1028, %v1011, %v897
      %v1045 = vsel %vm1028, %v1012, %v899
      %v1046 = vsel %vm1028, %v1013, %v901
      %v1047 = vsel %vm1028, %v1014, %v903
      %v1048 = vsel %vm1028, %v1015, %v905
      %v1049 = vsel %vm1028, %v1016, %v907
      %v1050 = vsel %vm1028, %v1017, %v909
      %v1051 = vsel %vm1028, %v1018, %v911
      %v1052 = vsel %vm1028, %v1019, %v913
      %v1053 = vsel %vm1028, %v1020, %v915
      %v1054 = vsel %vm1028, %v1021, %v917
      %v1055 = vsel %vm1028, %v1022, %v919
      %v1056 = vsel %vm1028, %v1023, %v921
      %v1057 = vsel %vm1028, %v1024, %v923
      %v1058 = vsel %vm1028, %v1025, %v925
      %v1059 = vsel %vm1028, %v1026, %v927
      %v1060 = vsel %vm1028, %v1027, %v929
      %v1061 = vld [vmem:[%s3] sm:$0xff]
      %v1062 = vld [vmem:[%s3 + $0x8] sm:$0xff]
      %v1064 = vlaneseq
      %v1065 = vshrl.u32 %v1064, 7
      %v1066 = vsub.s32 0, %v1065
      %v1067 = vrot.slane %v553, %v1066
      %vm1069 = vcmask 130048
      %v1071 = vsel %vm1069, %v1029, 0
      %v1074 = vsel %vm1069, %v1030, 0
      %v1077 = vsel %vm1069, %v1031, 0
      %v1080 = vsel %vm1069, %v1032, 0
      %v1083 = vsel %vm1069, %v1033, 0
      %v1086 = vsel %vm1069, %v1034, 0
      %v1089 = vsel %vm1069, %v1035, 0
      %v1092 = vsel %vm1069, %v1036, 0
      %v1095 = vsel %vm1069, %v1037, 0
      %v1098 = vsel %vm1069, %v1038, 0
      %v1101 = vsel %vm1069, %v1039, 0
      %v1104 = vsel %vm1069, %v1040, 0
      %v1107 = vsel %vm1069, %v1041, 0
      %v1110 = vsel %vm1069, %v1042, 0
      %v1113 = vsel %vm1069, %v1043, 0
      %v1116 = vsel %vm1069, %v1044, 0
      %v1119 = vsel %vm1069, %v1045, 0
      %v1122 = vsel %vm1069, %v1046, 0
      %v1125 = vsel %vm1069, %v1047, 0
      %v1128 = vsel %vm1069, %v1048, 0
      %v1131 = vsel %vm1069, %v1049, 0
      %v1134 = vsel %vm1069, %v1050, 0
      %v1137 = vsel %vm1069, %v1051, 0
      %v1140 = vsel %vm1069, %v1052, 0
      %v1143 = vsel %vm1069, %v1053, 0
      %v1146 = vsel %vm1069, %v1054, 0
      %v1149 = vsel %vm1069, %v1055, 0
      %v1152 = vsel %vm1069, %v1056, 0
      %v1155 = vsel %vm1069, %v1057, 0
      %v1158 = vsel %vm1069, %v1058, 0
      %v1161 = vsel %vm1069, %v1059, 0
      %v1164 = vsel %vm1069, %v1060, 0
      %1166 = vmatprep.subr.mxu0 0.0
      %1167 = vmatpush1.msra.mxu0 %v1061
      %1168 = vmatprep.subr.mxu0 0.0
      %1169 = vmatpush1.msra.mxu0 %v1062
      %1170 = vmatprep.subr.mxu0 0.0
      %1171 = vmatpush1.msra.mxu0 0.0
      %1172 = vmatprep.subr.mxu0 0.0
      %1173 = vmatpush1.msra.mxu0 0.0
      %1174 = vmatprep.subr.mxu0 0.0
      %1175 = vmatpush1.msra.mxu0 0.0
      %1176 = vmatprep.subr.mxu0 0.0
      %1177 = vmatpush1.msra.mxu0 0.0
      %1178 = vmatprep.subr.mxu0 0.0
      %1179 = vmatpush1.msra.mxu0 0.0
      %1180 = vmatprep.subr.mxu0 0.0
      %1181 = vmatpush1.msra.mxu0 0.0
      %1182 = vmatprep.subr.mxu0 0.0
      %1183 = vmatpush1.msra.mxu0 0.0
      %1184 = vmatprep.subr.mxu0 0.0
      %1185 = vmatpush1.msra.mxu0 0.0
      %1186 = vmatprep.subr.mxu0 0.0
      %1187 = vmatpush1.msra.mxu0 0.0
      %1188 = vmatprep.subr.mxu0 0.0
      %1189 = vmatpush1.msra.mxu0 0.0
      %1190 = vmatprep.subr.mxu0 0.0
      %1191 = vmatpush1.msra.mxu0 0.0
      %1192 = vmatprep.subr.mxu0 0.0
      %1193 = vmatpush1.msra.mxu0 0.0
      %1194 = vmatprep.subr.mxu0 0.0
      %1195 = vmatpush1.msra.mxu0 0.0
      %1196 = vmatprep.subr.mxu0 0.0
      %1197 = vmatpush1.msra.mxu0 0.0
      %1198 = vmatprep.subr.mxu0 0.0
      %1199 = vmatpush1.msra.mxu0 0.0
      %1200 = vmatprep.subr.mxu0 0.0
      %1201 = vmatpush1.msra.mxu0 0.0
      %1202 = vmatprep.subr.mxu0 0.0
      %1203 = vmatpush1.msra.mxu0 0.0
      %1204 = vmatprep.subr.mxu0 0.0
      %1205 = vmatpush1.msra.mxu0 0.0
      %1206 = vmatprep.subr.mxu0 0.0
      %1207 = vmatpush1.msra.mxu0 0.0
      %1208 = vmatprep.subr.mxu0 0.0
      %1209 = vmatpush1.msra.mxu0 0.0
      %1210 = vmatprep.subr.mxu0 0.0
      %1211 = vmatpush1.msra.mxu0 0.0
      %1212 = vmatprep.subr.mxu0 0.0
      %1213 = vmatpush1.msra.mxu0 0.0
      %1214 = vmatprep.subr.mxu0 0.0
      %1215 = vmatpush1.msra.mxu0 0.0
      %1216 = vmatprep.subr.mxu0 0.0
      %1217 = vmatpush1.msra.mxu0 0.0
      %1218 = vmatprep.subr.mxu0 0.0
      %1219 = vmatpush1.msra.mxu0 0.0
      %1220 = vmatprep.subr.mxu0 0.0
      %1221 = vmatpush1.msra.mxu0 0.0
      %1222 = vmatprep.subr.mxu0 0.0
      %1223 = vmatpush1.msra.mxu0 0.0
      %1224 = vmatprep.subr.mxu0 0.0
      %1225 = vmatpush1.msra.mxu0 0.0
      %1226 = vmatprep.subr.mxu0 0.0
      %1227 = vmatpush1.msra.mxu0 0.0
      %1228 = vmatprep.subr.mxu0 0.0
      %1229 = vmatpush1.msra.mxu0 0.0
      %1230 = vmatprep.mubr.f32.mxu0 0.0
      %1231 = vmatmul.mubr.f32.gmra.mrb[0].mxu0 %v1071
      %v1232 = vpop.f32.mrb[0].mxu0
      %v1233 = vadd.f32 %v1067, %v1232
      %v1234 = vpop.f32.mrb[0].mxu0
      %1235 = vmatprep.mubr.f32.mxu0 0.0
      %1236 = vmatmul.mubr.f32.gmra.mrb[0].mxu0 %v1074
      %v1237 = vpop.f32.mrb[0].mxu0
      %v1238 = vadd.f32 %v1067, %v1237
      %v1239 = vpop.f32.mrb[0].mxu0
      %1240 = vmatprep.mubr.f32.mxu0 0.0
      %1241 = vmatmul.mubr.f32.gmra.mrb[0].mxu0 %v1077
      %v1242 = vpop.f32.mrb[0].mxu0
      %v1243 = vadd.f32 %v1067, %v1242
      %v1244 = vpop.f32.mrb[0].mxu0
      %1245 = vmatprep.mubr.f32.mxu0 0.0
      %1246 = vmatmul.mubr.f32.gmra.mrb[0].mxu0 %v1080
      %v1247 = vpop.f32.mrb[0].mxu0
      %v1248 = vadd.f32 %v1067, %v1247
      %v1249 = vpop.f32.mrb[0].mxu0
      %1250 = vmatprep.mubr.f32.mxu0 0.0
      %1251 = vmatmul.mubr.f32.gmra.mrb[0].mxu0 %v1083
      %v1252 = vpop.f32.mrb[0].mxu0
      %v1253 = vadd.f32 %v1067, %v1252
      %v1254 = vpop.f32.mrb[0].mxu0
      %1255 = vmatprep.mubr.f32.mxu0 0.0
      %1256 = vmatmul.mubr.f32.gmra.mrb[0].mxu0 %v1086
      %v1257 = vpop.f32.mrb[0].mxu0
      %v1258 = vadd.f32 %v1067, %v1257
      %v1259 = vpop.f32.mrb[0].mxu0
      %1260 = vmatprep.mubr.f32.mxu0 0.0
      %1261 = vmatmul.mubr.f32.gmra.mrb[0].mxu0 %v1089
      %v1262 = vpop.f32.mrb[0].mxu0
      %v1263 = vadd.f32 %v1067, %v1262
      %v1264 = vpop.f32.mrb[0].mxu0
      %1265 = vmatprep.mubr.f32.mxu0 0.0
      %1266 = vmatmul.mubr.f32.gmra.mrb[0].mxu0 %v1092
      %v1267 = vpop.f32.mrb[0].mxu0
      %v1268 = vadd.f32 %v1067, %v1267
      %v1269 = vpop.f32.mrb[0].mxu0
      %1270 = vmatprep.mubr.f32.mxu0 0.0
      %1271 = vmatmul.mubr.f32.gmra.mrb[0].mxu0 %v1095
      %v1272 = vpop.f32.mrb[0].mxu0
      %v1273 = vadd.f32 %v1067, %v1272
      %v1274 = vpop.f32.mrb[0].mxu0
      %1275 = vmatprep.mubr.f32.mxu0 0.0
      %1276 = vmatmul.mubr.f32.gmra.mrb[0].mxu0 %v1098
      %v1277 = vpop.f32.mrb[0].mxu0
      %v1278 = vadd.f32 %v1067, %v1277
      %v1279 = vpop.f32.mrb[0].mxu0
      %1280 = vmatprep.mubr.f32.mxu0 0.0
      %1281 = vmatmul.mubr.f32.gmra.mrb[0].mxu0 %v1101
      %v1282 = vpop.f32.mrb[0].mxu0
      %v1283 = vadd.f32 %v1067, %v1282
      %v1284 = vpop.f32.mrb[0].mxu0
      %1285 = vmatprep.mubr.f32.mxu0 0.0
      %1286 = vmatmul.mubr.f32.gmra.mrb[0].mxu0 %v1104
      %v1287 = vpop.f32.mrb[0].mxu0
      %v1288 = vadd.f32 %v1067, %v1287
      %v1289 = vpop.f32.mrb[0].mxu0
      %1290 = vmatprep.mubr.f32.mxu0 0.0
      %1291 = vmatmul.mubr.f32.gmra.mrb[0].mxu0 %v1107
      %v1292 = vpop.f32.mrb[0].mxu0
      %v1293 = vadd.f32 %v1067, %v1292
      %v1294 = vpop.f32.mrb[0].mxu0
      %1295 = vmatprep.mubr.f32.mxu0 0.0
      %1296 = vmatmul.mubr.f32.gmra.mrb[0].mxu0 %v1110
      %v1297 = vpop.f32.mrb[0].mxu0
      %v1298 = vadd.f32 %v1067, %v1297
      %v1299 = vpop.f32.mrb[0].mxu0
      %1300 = vmatprep.mubr.f32.mxu0 0.0
      %1301 = vmatmul.mubr.f32.gmra.mrb[0].mxu0 %v1113
      %v1302 = vpop.f32.mrb[0].mxu0
      %v1303 = vadd.f32 %v1067, %v1302
      %v1304 = vpop.f32.mrb[0].mxu0
      %1305 = vmatprep.mubr.f32.mxu0 0.0
      %1306 = vmatmul.mubr.f32.gmra.mrb[0].mxu0 %v1116
      %v1307 = vpop.f32.mrb[0].mxu0
      %v1308 = vadd.f32 %v1067, %v1307
      %v1309 = vpop.f32.mrb[0].mxu0
      %1310 = vmatprep.mubr.f32.mxu0 0.0
      %1311 = vmatmul.mubr.f32.gmra.mrb[0].mxu0 %v1119
      %v1312 = vpop.f32.mrb[0].mxu0
      %v1313 = vadd.f32 %v1067, %v1312
      %v1314 = vpop.f32.mrb[0].mxu0
      %1315 = vmatprep.mubr.f32.mxu0 0.0
      %1316 = vmatmul.mubr.f32.gmra.mrb[0].mxu0 %v1122
      %v1317 = vpop.f32.mrb[0].mxu0
      %v1318 = vadd.f32 %v1067, %v1317
      %v1319 = vpop.f32.mrb[0].mxu0
      %1320 = vmatprep.mubr.f32.mxu0 0.0
      %1321 = vmatmul.mubr.f32.gmra.mrb[0].mxu0 %v1125
      %v1322 = vpop.f32.mrb[0].mxu0
      %v1323 = vadd.f32 %v1067, %v1322
      %v1324 = vpop.f32.mrb[0].mxu0
      %1325 = vmatprep.mubr.f32.mxu0 0.0
      %1326 = vmatmul.mubr.f32.gmra.mrb[0].mxu0 %v1128
      %v1327 = vpop.f32.mrb[0].mxu0
      %v1328 = vadd.f32 %v1067, %v1327
      %v1329 = vpop.f32.mrb[0].mxu0
      %1330 = vmatprep.mubr.f32.mxu0 0.0
      %1331 = vmatmul.mubr.f32.gmra.mrb[0].mxu0 %v1131
      %v1332 = vpop.f32.mrb[0].mxu0
      %v1333 = vadd.f32 %v1067, %v1332
      %v1334 = vpop.f32.mrb[0].mxu0
      %1335 = vmatprep.mubr.f32.mxu0 0.0
      %1336 = vmatmul.mubr.f32.gmra.mrb[0].mxu0 %v1134
      %v1337 = vpop.f32.mrb[0].mxu0
      %v1338 = vadd.f32 %v1067, %v1337
      %v1339 = vpop.f32.mrb[0].mxu0
      %1340 = vmatprep.mubr.f32.mxu0 0.0
      %1341 = vmatmul.mubr.f32.gmra.mrb[0].mxu0 %v1137
      %v1342 = vpop.f32.mrb[0].mxu0
      %v1343 = vadd.f32 %v1067, %v1342
      %v1344 = vpop.f32.mrb[0].mxu0
      %1345 = vmatprep.mubr.f32.mxu0 0.0
      %1346 = vmatmul.mubr.f32.gmra.mrb[0].mxu0 %v1140
      %v1347 = vpop.f32.mrb[0].mxu0
      %v1348 = vadd.f32 %v1067, %v1347
      %v1349 = vpop.f32.mrb[0].mxu0
      %1350 = vmatprep.mubr.f32.mxu0 0.0
      %1351 = vmatmul.mubr.f32.gmra.mrb[0].mxu0 %v1143
      %v1352 = vpop.f32.mrb[0].mxu0
      %v1353 = vadd.f32 %v1067, %v1352
      %v1354 = vpop.f32.mrb[0].mxu0
      %1355 = vmatprep.mubr.f32.mxu0 0.0
      %1356 = vmatmul.mubr.f32.gmra.mrb[0].mxu0 %v1146
      %v1357 = vpop.f32.mrb[0].mxu0
      %v1358 = vadd.f32 %v1067, %v1357
      %v1359 = vpop.f32.mrb[0].mxu0
      %1360 = vmatprep.mubr.f32.mxu0 0.0
      %1361 = vmatmul.mubr.f32.gmra.mrb[0].mxu0 %v1149
      %v1362 = vpop.f32.mrb[0].mxu0
      %v1363 = vadd.f32 %v1067, %v1362
      %v1364 = vpop.f32.mrb[0].mxu0
      %1365 = vmatprep.mubr.f32.mxu0 0.0
      %1366 = vmatmul.mubr.f32.gmra.mrb[0].mxu0 %v1152
      %v1367 = vpop.f32.mrb[0].mxu0
      %v1368 = vadd.f32 %v1067, %v1367
      %v1369 = vpop.f32.mrb[0].mxu0
      %1370 = vmatprep.mubr.f32.mxu0 0.0
      %1371 = vmatmul.mubr.f32.gmra.mrb[0].mxu0 %v1155
      %v1372 = vpop.f32.mrb[0].mxu0
      %v1373 = vadd.f32 %v1067, %v1372
      %v1374 = vpop.f32.mrb[0].mxu0
      %1375 = vmatprep.mubr.f32.mxu0 0.0
      %1376 = vmatmul.mubr.f32.gmra.mrb[0].mxu0 %v1158
      %v1377 = vpop.f32.mrb[0].mxu0
      %v1378 = vadd.f32 %v1067, %v1377
      %v1379 = vpop.f32.mrb[0].mxu0
      %1380 = vmatprep.mubr.f32.mxu0 0.0
      %1381 = vmatmul.mubr.f32.gmra.mrb[0].mxu0 %v1161
      %v1382 = vpop.f32.mrb[0].mxu0
      %v1383 = vadd.f32 %v1067, %v1382
      %v1384 = vpop.f32.mrb[0].mxu0
      %1385 = vmatprep.mubr.f32.mxu0 0.0
      %1386 = vmatmul.mubr.f32.gmra.mrb[0].mxu0 %v1164
      %v1387 = vpop.f32.mrb[0].mxu0
      %v1388 = vadd.f32 %v1067, %v1387
      %v1389 = vpop.f32.mrb[0].mxu0
      %1390 = vdwg.mxu0
      %1391 = vst.msk [vmem:[%s335] sm:$0xff] %vm962, %v1233
      %1392 = vst.msk [vmem:[%s335 + $0x8] sm:$0xff] %vm962, %v1238
      %1393 = vst.msk [vmem:[%s335 + $0x20] sm:$0xff] %vm962, %v1243
      %1394 = vst.msk [vmem:[%s335 + $0x28] sm:$0xff] %vm962, %v1248
      %1395 = vst.msk [vmem:[%s335 + $0x40] sm:$0xff] %vm962, %v1253
      %1396 = vst.msk [vmem:[%s335 + $0x48] sm:$0xff] %vm962, %v1258
      %1397 = vst.msk [vmem:[%s335 + $0x60] sm:$0xff] %vm962, %v1263
      %1398 = vst.msk [vmem:[%s335 + $0x68] sm:$0xff] %vm962, %v1268
      %1399 = vst.msk [vmem:[%s335 + $0x80] sm:$0xff] %vm962, %v1273
      %1400 = vst.msk [vmem:[%s335 + $0x88] sm:$0xff] %vm962, %v1278
      %1401 = vst.msk [vmem:[%s335 + $0xa0] sm:$0xff] %vm962, %v1283
      %1402 = vst.msk [vmem:[%s335 + $0xa8] sm:$0xff] %vm962, %v1288
      %1403 = vst.msk [vmem:[%s335 + $0xc0] sm:$0xff] %vm962, %v1293
      %1404 = vst.msk [vmem:[%s335 + $0xc8] sm:$0xff] %vm962, %v1298
      %1405 = vst.msk [vmem:[%s335 + $0xe0] sm:$0xff] %vm962, %v1303
      %1406 = vst.msk [vmem:[%s335 + $0xe8] sm:$0xff] %vm962, %v1308
      %1407 = vst.msk [vmem:[%s335 + $0x100] sm:$0xff] %vm962, %v1313
      %1408 = vst.msk [vmem:[%s335 + $0x108] sm:$0xff] %vm962, %v1318
      %1409 = vst.msk [vmem:[%s335 + $0x120] sm:$0xff] %vm962, %v1323
      %1410 = vst.msk [vmem:[%s335 + $0x128] sm:$0xff] %vm962, %v1328
      %1411 = vst.msk [vmem:[%s335 + $0x140] sm:$0xff] %vm962, %v1333
      %1412 = vst.msk [vmem:[%s335 + $0x148] sm:$0xff] %vm962, %v1338
      %1413 = vst.msk [vmem:[%s335 + $0x160] sm:$0xff] %vm962, %v1343
      %1414 = vst.msk [vmem:[%s335 + $0x168] sm:$0xff] %vm962, %v1348
      %1415 = vst.msk [vmem:[%s335 + $0x180] sm:$0xff] %vm962, %v1353
      %1416 = vst.msk [vmem:[%s335 + $0x188] sm:$0xff] %vm962, %v1358
      %1417 = vst.msk [vmem:[%s335 + $0x1a0] sm:$0xff] %vm962, %v1363
      %1418 = vst.msk [vmem:[%s335 + $0x1a8] sm:$0xff] %vm962, %v1368
      %1419 = vst.msk [vmem:[%s335 + $0x1c0] sm:$0xff] %vm962, %v1373
      %1420 = vst.msk [vmem:[%s335 + $0x1c8] sm:$0xff] %vm962, %v1378
      %1421 = vst.msk [vmem:[%s335 + $0x1e0] sm:$0xff] %vm962, %v1383
      %1422 = vst.msk [vmem:[%s335 + $0x1e8] sm:$0xff] %vm962, %v1388
      %1423 = vrot.lane.b32.xlu0 %v590, 4
      %v1424 = vpop.permute.xlu0 %1423
      %1425 = vrot.lane.b32.xlu0 %v595, 4
      %v1426 = vpop.permute.xlu0 %1425
      %1427 = vrot.lane.b32.xlu0 %v600, 4
      %v1428 = vpop.permute.xlu0 %1427
      %1429 = vrot.lane.b32.xlu0 %v605, 4
      %v1430 = vpop.permute.xlu0 %1429
      %1431 = vrot.lane.b32.xlu0 %v610, 4
      %v1432 = vpop.permute.xlu0 %1431
      %1433 = vrot.lane.b32.xlu0 %v615, 4
      %v1434 = vpop.permute.xlu0 %1433
      %1435 = vrot.lane.b32.xlu0 %v620, 4
      %v1436 = vpop.permute.xlu0 %1435
      %1437 = vrot.lane.b32.xlu0 %v625, 4
      %v1438 = vpop.permute.xlu0 %1437
      %1439 = vrot.lane.b32.xlu0 %v630, 4
      %v1440 = vpop.permute.xlu0 %1439
      %1441 = vrot.lane.b32.xlu0 %v635, 4
      %v1442 = vpop.permute.xlu0 %1441
      %1443 = vrot.lane.b32.xlu0 %v640, 4
      %v1444 = vpop.permute.xlu0 %1443
      %1445 = vrot.lane.b32.xlu0 %v645, 4
      %v1446 = vpop.permute.xlu0 %1445
      %1447 = vrot.lane.b32.xlu0 %v650, 4
      %v1448 = vpop.permute.xlu0 %1447
      %1449 = vrot.lane.b32.xlu0 %v655, 4
      %v1450 = vpop.permute.xlu0 %1449
      %1451 = vrot.lane.b32.xlu0 %v660, 4
      %v1452 = vpop.permute.xlu0 %1451
      %1453 = vrot.lane.b32.xlu0 %v665, 4
      %v1454 = vpop.permute.xlu0 %1453
      %1471 = vrot.lane.b32.xlu0 %v536, 8
      %v1472 = vpop.permute.xlu0 %1471
      %1473 = vrot.lane.b32.xlu0 %v537, 8
      %v1474 = vpop.permute.xlu0 %1473
      %1475 = vrot.lane.b32.xlu0 %v538, 8
      %v1476 = vpop.permute.xlu0 %1475
      %1477 = vrot.lane.b32.xlu0 %v539, 8
      %v1478 = vpop.permute.xlu0 %1477
      %1479 = vrot.lane.b32.xlu0 %v540, 8
      %v1480 = vpop.permute.xlu0 %1479
      %1481 = vrot.lane.b32.xlu0 %v541, 8
      %v1482 = vpop.permute.xlu0 %1481
      %1483 = vrot.lane.b32.xlu0 %v542, 8
      %v1484 = vpop.permute.xlu0 %1483
      %1485 = vrot.lane.b32.xlu0 %v543, 8
      %v1486 = vpop.permute.xlu0 %1485
      %1487 = vrot.lane.b32.xlu0 %v544, 8
      %v1488 = vpop.permute.xlu0 %1487
      %1489 = vrot.lane.b32.xlu0 %v545, 8
      %v1490 = vpop.permute.xlu0 %1489
      %1491 = vrot.lane.b32.xlu0 %v546, 8
      %v1492 = vpop.permute.xlu0 %1491
      %1493 = vrot.lane.b32.xlu0 %v547, 8
      %v1494 = vpop.permute.xlu0 %1493
      %1495 = vrot.lane.b32.xlu0 %v548, 8
      %v1496 = vpop.permute.xlu0 %1495
      %1497 = vrot.lane.b32.xlu0 %v549, 8
      %v1498 = vpop.permute.xlu0 %1497
      %1499 = vrot.lane.b32.xlu0 %v550, 8
      %v1500 = vpop.permute.xlu0 %1499
      %1501 = vrot.lane.b32.xlu0 %v551, 8
      %v1502 = vpop.permute.xlu0 %1501
      %1519 = vrot.lane.b32.xlu0 %v595, 12
      %v1520 = vpop.permute.xlu0 %1519
      %1521 = vrot.lane.b32.xlu0 %v600, 12
      %v1522 = vpop.permute.xlu0 %1521
      %1523 = vrot.lane.b32.xlu0 %v605, 12
      %v1524 = vpop.permute.xlu0 %1523
      %1525 = vrot.lane.b32.xlu0 %v610, 12
      %v1526 = vpop.permute.xlu0 %1525
      %1527 = vrot.lane.b32.xlu0 %v615, 12
      %v1528 = vpop.permute.xlu0 %1527
      %1529 = vrot.lane.b32.xlu0 %v620, 12
      %v1530 = vpop.permute.xlu0 %1529
      %1531 = vrot.lane.b32.xlu0 %v625, 12
      %v1532 = vpop.permute.xlu0 %1531
      %1533 = vrot.lane.b32.xlu0 %v630, 12
      %v1534 = vpop.permute.xlu0 %1533
      %1535 = vrot.lane.b32.xlu0 %v635, 12
      %v1536 = vpop.permute.xlu0 %1535
      %1537 = vrot.lane.b32.xlu0 %v640, 12
      %v1538 = vpop.permute.xlu0 %1537
      %1539 = vrot.lane.b32.xlu0 %v645, 12
      %v1540 = vpop.permute.xlu0 %1539
      %1541 = vrot.lane.b32.xlu0 %v650, 12
      %v1542 = vpop.permute.xlu0 %1541
      %1543 = vrot.lane.b32.xlu0 %v655, 12
      %v1544 = vpop.permute.xlu0 %1543
      %1545 = vrot.lane.b32.xlu0 %v660, 12
      %v1546 = vpop.permute.xlu0 %1545
      %1547 = vrot.lane.b32.xlu0 %v665, 12
      %v1548 = vpop.permute.xlu0 %1547
      %1549 = vrot.lane.b32.xlu0 %v864, 12
      %v1550 = vpop.permute.xlu0 %1549
      %v1567 = vsel %vm962, %v535, %v1424
      %v1568 = vsel %vm962, %v536, %v1426
      %v1569 = vsel %vm962, %v537, %v1428
      %v1570 = vsel %vm962, %v538, %v1430
      %v1571 = vsel %vm962, %v539, %v1432
      %v1572 = vsel %vm962, %v540, %v1434
      %v1573 = vsel %vm962, %v541, %v1436
      %v1574 = vsel %vm962, %v542, %v1438
      %v1575 = vsel %vm962, %v543, %v1440
      %v1576 = vsel %vm962, %v544, %v1442
      %v1577 = vsel %vm962, %v545, %v1444
      %v1578 = vsel %vm962, %v546, %v1446
      %v1579 = vsel %vm962, %v547, %v1448
      %v1580 = vsel %vm962, %v548, %v1450
      %v1581 = vsel %vm962, %v549, %v1452
      %v1582 = vsel %vm962, %v550, %v1454
      %v1583 = vsel %vm995, %v1567, %v1472
      %v1584 = vsel %vm995, %v1568, %v1474
      %v1585 = vsel %vm995, %v1569, %v1476
      %v1586 = vsel %vm995, %v1570, %v1478
      %v1587 = vsel %vm995, %v1571, %v1480
      %v1588 = vsel %vm995, %v1572, %v1482
      %v1589 = vsel %vm995, %v1573, %v1484
      %v1590 = vsel %vm995, %v1574, %v1486
      %v1591 = vsel %vm995, %v1575, %v1488
      %v1592 = vsel %vm995, %v1576, %v1490
      %v1593 = vsel %vm995, %v1577, %v1492
      %v1594 = vsel %vm995, %v1578, %v1494
      %v1595 = vsel %vm995, %v1579, %v1496
      %v1596 = vsel %vm995, %v1580, %v1498
      %v1597 = vsel %vm995, %v1581, %v1500
      %v1598 = vsel %vm995, %v1582, %v1502
      %v1599 = vsel %vm1028, %v1583, %v1520
      %v1600 = vsel %vm1028, %v1584, %v1522
      %v1601 = vsel %vm1028, %v1585, %v1524
      %v1602 = vsel %vm1028, %v1586, %v1526
      %v1603 = vsel %vm1028, %v1587, %v1528
      %v1604 = vsel %vm1028, %v1588, %v1530
      %v1605 = vsel %vm1028, %v1589, %v1532
      %v1606 = vsel %vm1028, %v1590, %v1534
      %v1607 = vsel %vm1028, %v1591, %v1536
      %v1608 = vsel %vm1028, %v1592, %v1538
      %v1609 = vsel %vm1028, %v1593, %v1540
      %v1610 = vsel %vm1028, %v1594, %v1542
      %v1611 = vsel %vm1028, %v1595, %v1544
      %v1612 = vsel %vm1028, %v1596, %v1546
      %v1613 = vsel %vm1028, %v1597, %v1548
      %v1614 = vsel %vm1028, %v1598, %v1550
      %v1631 = vrot.slane %v1029, 1
      %v1632 = vrot.slane %v1030, 1
      %v1633 = vsel %vm586, %v1631, %v1632
      %v1634 = vrot.slane %v1599, 1
      %v1635 = vsel %vm586, %v1632, %v1634
      %v1636 = vrot.slane %v1031, 1
      %v1637 = vrot.slane %v1032, 1
      %v1638 = vsel %vm586, %v1636, %v1637
      %v1639 = vrot.slane %v1600, 1
      %v1640 = vsel %vm586, %v1637, %v1639
      %v1641 = vrot.slane %v1033, 1
      %v1642 = vrot.slane %v1034, 1
      %v1643 = vsel %vm586, %v1641, %v1642
      %v1644 = vrot.slane %v1601, 1
      %v1645 = vsel %vm586, %v1642, %v1644
      %v1646 = vrot.slane %v1035, 1
      %v1647 = vrot.slane %v1036, 1
      %v1648 = vsel %vm586, %v1646, %v1647
      %v1649 = vrot.slane %v1602, 1
      %v1650 = vsel %vm586, %v1647, %v1649
      %v1651 = vrot.slane %v1037, 1
      %v1652 = vrot.slane %v1038, 1
      %v1653 = vsel %vm586, %v1651, %v1652
      %v1654 = vrot.slane %v1603, 1
      %v1655 = vsel %vm586, %v1652, %v1654
      %v1656 = vrot.slane %v1039, 1
      %v1657 = vrot.slane %v1040, 1
      %v1658 = vsel %vm586, %v1656, %v1657
      %v1659 = vrot.slane %v1604, 1
      %v1660 = vsel %vm586, %v1657, %v1659
      %v1661 = vrot.slane %v1041, 1
      %v1662 = vrot.slane %v1042, 1
      %v1663 = vsel %vm586, %v1661, %v1662
      %v1664 = vrot.slane %v1605, 1
      %v1665 = vsel %vm586, %v1662, %v1664
      %v1666 = vrot.slane %v1043, 1
      %v1667 = vrot.slane %v1044, 1
      %v1668 = vsel %vm586, %v1666, %v1667
      %v1669 = vrot.slane %v1606, 1
      %v1670 = vsel %vm586, %v1667, %v1669
      %v1671 = vrot.slane %v1045, 1
      %v1672 = vrot.slane %v1046, 1
      %v1673 = vsel %vm586, %v1671, %v1672
      %v1674 = vrot.slane %v1607, 1
      %v1675 = vsel %vm586, %v1672, %v1674
      %v1676 = vrot.slane %v1047, 1
      %v1677 = vrot.slane %v1048, 1
      %v1678 = vsel %vm586, %v1676, %v1677
      %v1679 = vrot.slane %v1608, 1
      %v1680 = vsel %vm586, %v1677, %v1679
      %v1681 = vrot.slane %v1049, 1
      %v1682 = vrot.slane %v1050, 1
      %v1683 = vsel %vm586, %v1681, %v1682
      %v1684 = vrot.slane %v1609, 1
      %v1685 = vsel %vm586, %v1682, %v1684
      %v1686 = vrot.slane %v1051, 1
      %v1687 = vrot.slane %v1052, 1
      %v1688 = vsel %vm586, %v1686, %v1687
      %v1689 = vrot.slane %v1610, 1
      %v1690 = vsel %vm586, %v1687, %v1689
      %v1691 = vrot.slane %v1053, 1
      %v1692 = vrot.slane %v1054, 1
      %v1693 = vsel %vm586, %v1691, %v1692
      %v1694 = vrot.slane %v1611, 1
      %v1695 = vsel %vm586, %v1692, %v1694
      %v1696 = vrot.slane %v1055, 1
      %v1697 = vrot.slane %v1056, 1
      %v1698 = vsel %vm586, %v1696, %v1697
      %v1699 = vrot.slane %v1612, 1
      %v1700 = vsel %vm586, %v1697, %v1699
      %v1701 = vrot.slane %v1057, 1
      %v1702 = vrot.slane %v1058, 1
      %v1703 = vsel %vm586, %v1701, %v1702
      %v1704 = vrot.slane %v1613, 1
      %v1705 = vsel %vm586, %v1702, %v1704
      %v1706 = vrot.slane %v1059, 1
      %v1707 = vrot.slane %v1060, 1
      %v1708 = vsel %vm586, %v1706, %v1707
      %v1709 = vrot.slane %v1614, 1
      %v1710 = vsel %vm586, %v1707, %v1709
      %s1711 = scalar_lea.vmem %s3, 16
      %v1712 = vld [vmem:[%s1711] sm:$0xff]
      %v1713 = vld [vmem:[%s1711 + $0x8] sm:$0xff]
      %v1714 = vsel %vm1069, %v1633, 0
      %v1716 = vsel %vm1069, %v1635, 0
      %v1718 = vsel %vm1069, %v1638, 0
      %v1720 = vsel %vm1069, %v1640, 0
      %v1722 = vsel %vm1069, %v1643, 0
      %v1724 = vsel %vm1069, %v1645, 0
      %v1726 = vsel %vm1069, %v1648, 0
      %v1728 = vsel %vm1069, %v1650, 0
      %v1730 = vsel %vm1069, %v1653, 0
      %v1732 = vsel %vm1069, %v1655, 0
      %v1734 = vsel %vm1069, %v1658, 0
      %v1736 = vsel %vm1069, %v1660, 0
      %v1738 = vsel %vm1069, %v1663, 0
      %v1740 = vsel %vm1069, %v1665, 0
      %v1742 = vsel %vm1069, %v1668, 0
      %v1744 = vsel %vm1069, %v1670, 0
      %v1746 = vsel %vm1069, %v1673, 0
      %v1748 = vsel %vm1069, %v1675, 0
      %v1750 = vsel %vm1069, %v1678, 0
      %v1752 = vsel %vm1069, %v1680, 0
      %v1754 = vsel %vm1069, %v1683, 0
      %v1756 = vsel %vm1069, %v1685, 0
      %v1758 = vsel %vm1069, %v1688, 0
      %v1760 = vsel %vm1069, %v1690, 0
      %v1762 = vsel %vm1069, %v1693, 0
      %v1764 = vsel %vm1069, %v1695, 0
      %v1766 = vsel %vm1069, %v1698, 0
      %v1768 = vsel %vm1069, %v1700, 0
      %v1770 = vsel %vm1069, %v1703, 0
      %v1772 = vsel %vm1069, %v1705, 0
      %v1774 = vsel %vm1069, %v1708, 0
      %v1776 = vsel %vm1069, %v1710, 0
      %1778 = vmatprep.subr.mxu0 0.0
      %1779 = vmatpush1.msra.mxu0 %v1712
      %1780 = vmatprep.subr.mxu0 0.0
      %1781 = vmatpush1.msra.mxu0 %v1713
      %1782 = vmatprep.subr.mxu0 0.0
      %1783 = vmatpush1.msra.mxu0 0.0
      %1784 = vmatprep.subr.mxu0 0.0
      %1785 = vmatpush1.msra.mxu0 0.0
      %1786 = vmatprep.subr.mxu0 0.0
      %1787 = vmatpush1.msra.mxu0 0.0
      %1788 = vmatprep.subr.mxu0 0.0
      %1789 = vmatpush1.msra.mxu0 0.0
      %1790 = vmatprep.subr.mxu0 0.0
      %1791 = vmatpush1.msra.mxu0 0.0
      %1792 = vmatprep.subr.mxu0 0.0
      %1793 = vmatpush1.msra.mxu0 0.0
      %1794 = vmatprep.subr.mxu0 0.0
      %1795 = vmatpush1.msra.mxu0 0.0
      %1796 = vmatprep.subr.mxu0 0.0
      %1797 = vmatpush1.msra.mxu0 0.0
      %1798 = vmatprep.subr.mxu0 0.0
      %1799 = vmatpush1.msra.mxu0 0.0
      %1800 = vmatprep.subr.mxu0 0.0
      %1801 = vmatpush1.msra.mxu0 0.0
      %1802 = vmatprep.subr.mxu0 0.0
      %1803 = vmatpush1.msra.mxu0 0.0
      %1804 = vmatprep.subr.mxu0 0.0
      %1805 = vmatpush1.msra.mxu0 0.0
      %1806 = vmatprep.subr.mxu0 0.0
      %1807 = vmatpush1.msra.mxu0 0.0
      %1808 = vmatprep.subr.mxu0 0.0
      %1809 = vmatpush1.msra.mxu0 0.0
      %1810 = vmatprep.subr.mxu0 0.0
      %1811 = vmatpush1.msra.mxu0 0.0
      %1812 = vmatprep.subr.mxu0 0.0
      %1813 = vmatpush1.msra.mxu0 0.0
      %1814 = vmatprep.subr.mxu0 0.0
      %1815 = vmatpush1.msra.mxu0 0.0
      %1816 = vmatprep.subr.mxu0 0.0
      %1817 = vmatpush1.msra.mxu0 0.0
      %1818 = vmatprep.subr.mxu0 0.0
      %1819 = vmatpush1.msra.mxu0 0.0
      %1820 = vmatprep.subr.mxu0 0.0
      %1821 = vmatpush1.msra.mxu0 0.0
      %1822 = vmatprep.subr.mxu0 0.0
      %1823 = vmatpush1.msra.mxu0 0.0
      %1824 = vmatprep.subr.mxu0 0.0
      %1825 = vmatpush1.msra.mxu0 0.0
      %1826 = vmatprep.subr.mxu0 0.0
      %1827 = vmatpush1.msra.mxu0 0.0
      %1828 = vmatprep.subr.mxu0 0.0
      %1829 = vmatpush1.msra.mxu0 0.0
      %1830 = vmatprep.subr.mxu0 0.0
      %1831 = vmatpush1.msra.mxu0 0.0
      %1832 = vmatprep.subr.mxu0 0.0
      %1833 = vmatpush1.msra.mxu0 0.0
      %1834 = vmatprep.subr.mxu0 0.0
      %1835 = vmatpush1.msra.mxu0 0.0
      %1836 = vmatprep.subr.mxu0 0.0
      %1837 = vmatpush1.msra.mxu0 0.0
      %1838 = vmatprep.subr.mxu0 0.0
      %1839 = vmatpush1.msra.mxu0 0.0
      %1840 = vmatprep.subr.mxu0 0.0
      %1841 = vmatpush1.msra.mxu0 0.0
      %1842 = vmatprep.mubr.f32.mxu0 0.0
      %1843 = vmatmul.mubr.f32.gmra.mrb[0].mxu0 %v1714
      %v1844 = vpop.f32.mrb[0].mxu0
      %v1845 = vadd.f32 %v1067, %v1844
      %v1846 = vpop.f32.mrb[0].mxu0
      %1847 = vmatprep.mubr.f32.mxu0 0.0
      %1848 = vmatmul.mubr.f32.gmra.mrb[0].mxu0 %v1716
      %v1849 = vpop.f32.mrb[0].mxu0
      %v1850 = vadd.f32 %v1067, %v1849
      %v1851 = vpop.f32.mrb[0].mxu0
      %1852 = vmatprep.mubr.f32.mxu0 0.0
      %1853 = vmatmul.mubr.f32.gmra.mrb[0].mxu0 %v1718
      %v1854 = vpop.f32.mrb[0].mxu0
      %v1855 = vadd.f32 %v1067, %v1854
      %v1856 = vpop.f32.mrb[0].mxu0
      %1857 = vmatprep.mubr.f32.mxu0 0.0
      %1858 = vmatmul.mubr.f32.gmra.mrb[0].mxu0 %v1720
      %v1859 = vpop.f32.mrb[0].mxu0
      %v1860 = vadd.f32 %v1067, %v1859
      %v1861 = vpop.f32.mrb[0].mxu0
      %1862 = vmatprep.mubr.f32.mxu0 0.0
      %1863 = vmatmul.mubr.f32.gmra.mrb[0].mxu0 %v1722
      %v1864 = vpop.f32.mrb[0].mxu0
      %v1865 = vadd.f32 %v1067, %v1864
      %v1866 = vpop.f32.mrb[0].mxu0
      %1867 = vmatprep.mubr.f32.mxu0 0.0
      %1868 = vmatmul.mubr.f32.gmra.mrb[0].mxu0 %v1724
      %v1869 = vpop.f32.mrb[0].mxu0
      %v1870 = vadd.f32 %v1067, %v1869
      %v1871 = vpop.f32.mrb[0].mxu0
      %1872 = vmatprep.mubr.f32.mxu0 0.0
      %1873 = vmatmul.mubr.f32.gmra.mrb[0].mxu0 %v1726
      %v1874 = vpop.f32.mrb[0].mxu0
      %v1875 = vadd.f32 %v1067, %v1874
      %v1876 = vpop.f32.mrb[0].mxu0
      %1877 = vmatprep.mubr.f32.mxu0 0.0
      %1878 = vmatmul.mubr.f32.gmra.mrb[0].mxu0 %v1728
      %v1879 = vpop.f32.mrb[0].mxu0
      %v1880 = vadd.f32 %v1067, %v1879
      %v1881 = vpop.f32.mrb[0].mxu0
      %1882 = vmatprep.mubr.f32.mxu0 0.0
      %1883 = vmatmul.mubr.f32.gmra.mrb[0].mxu0 %v1730
      %v1884 = vpop.f32.mrb[0].mxu0
      %v1885 = vadd.f32 %v1067, %v1884
      %v1886 = vpop.f32.mrb[0].mxu0
      %1887 = vmatprep.mubr.f32.mxu0 0.0
      %1888 = vmatmul.mubr.f32.gmra.mrb[0].mxu0 %v1732
      %v1889 = vpop.f32.mrb[0].mxu0
      %v1890 = vadd.f32 %v1067, %v1889
      %v1891 = vpop.f32.mrb[0].mxu0
      %1892 = vmatprep.mubr.f32.mxu0 0.0
      %1893 = vmatmul.mubr.f32.gmra.mrb[0].mxu0 %v1734
      %v1894 = vpop.f32.mrb[0].mxu0
      %v1895 = vadd.f32 %v1067, %v1894
      %v1896 = vpop.f32.mrb[0].mxu0
      %1897 = vmatprep.mubr.f32.mxu0 0.0
      %1898 = vmatmul.mubr.f32.gmra.mrb[0].mxu0 %v1736
      %v1899 = vpop.f32.mrb[0].mxu0
      %v1900 = vadd.f32 %v1067, %v1899
      %v1901 = vpop.f32.mrb[0].mxu0
      %1902 = vmatprep.mubr.f32.mxu0 0.0
      %1903 = vmatmul.mubr.f32.gmra.mrb[0].mxu0 %v1738
      %v1904 = vpop.f32.mrb[0].mxu0
      %v1905 = vadd.f32 %v1067, %v1904
      %v1906 = vpop.f32.mrb[0].mxu0
      %1907 = vmatprep.mubr.f32.mxu0 0.0
      %1908 = vmatmul.mubr.f32.gmra.mrb[0].mxu0 %v1740
      %v1909 = vpop.f32.mrb[0].mxu0
      %v1910 = vadd.f32 %v1067, %v1909
      %v1911 = vpop.f32.mrb[0].mxu0
      %1912 = vmatprep.mubr.f32.mxu0 0.0
      %1913 = vmatmul.mubr.f32.gmra.mrb[0].mxu0 %v1742
      %v1914 = vpop.f32.mrb[0].mxu0
      %v1915 = vadd.f32 %v1067, %v1914
      %v1916 = vpop.f32.mrb[0].mxu0
      %1917 = vmatprep.mubr.f32.mxu0 0.0
      %1918 = vmatmul.mubr.f32.gmra.mrb[0].mxu0 %v1744
      %v1919 = vpop.f32.mrb[0].mxu0
      %v1920 = vadd.f32 %v1067, %v1919
      %v1921 = vpop.f32.mrb[0].mxu0
      %1922 = vmatprep.mubr.f32.mxu0 0.0
      %1923 = vmatmul.mubr.f32.gmra.mrb[0].mxu0 %v1746
      %v1924 = vpop.f32.mrb[0].mxu0
      %v1925 = vadd.f32 %v1067, %v1924
      %v1926 = vpop.f32.mrb[0].mxu0
      %1927 = vmatprep.mubr.f32.mxu0 0.0
      %1928 = vmatmul.mubr.f32.gmra.mrb[0].mxu0 %v1748
      %v1929 = vpop.f32.mrb[0].mxu0
      %v1930 = vadd.f32 %v1067, %v1929
      %v1931 = vpop.f32.mrb[0].mxu0
      %1932 = vmatprep.mubr.f32.mxu0 0.0
      %1933 = vmatmul.mubr.f32.gmra.mrb[0].mxu0 %v1750
      %v1934 = vpop.f32.mrb[0].mxu0
      %v1935 = vadd.f32 %v1067, %v1934
      %v1936 = vpop.f32.mrb[0].mxu0
      %1937 = vmatprep.mubr.f32.mxu0 0.0
      %1938 = vmatmul.mubr.f32.gmra.mrb[0].mxu0 %v1752
      %v1939 = vpop.f32.mrb[0].mxu0
      %v1940 = vadd.f32 %v1067, %v1939
      %v1941 = vpop.f32.mrb[0].mxu0
      %1942 = vmatprep.mubr.f32.mxu0 0.0
      %1943 = vmatmul.mubr.f32.gmra.mrb[0].mxu0 %v1754
      %v1944 = vpop.f32.mrb[0].mxu0
      %v1945 = vadd.f32 %v1067, %v1944
      %v1946 = vpop.f32.mrb[0].mxu0
      %1947 = vmatprep.mubr.f32.mxu0 0.0
      %1948 = vmatmul.mubr.f32.gmra.mrb[0].mxu0 %v1756
      %v1949 = vpop.f32.mrb[0].mxu0
      %v1950 = vadd.f32 %v1067, %v1949
      %v1951 = vpop.f32.mrb[0].mxu0
      %1952 = vmatprep.mubr.f32.mxu0 0.0
      %1953 = vmatmul.mubr.f32.gmra.mrb[0].mxu0 %v1758
      %v1954 = vpop.f32.mrb[0].mxu0
      %v1955 = vadd.f32 %v1067, %v1954
      %v1956 = vpop.f32.mrb[0].mxu0
      %1957 = vmatprep.mubr.f32.mxu0 0.0
      %1958 = vmatmul.mubr.f32.gmra.mrb[0].mxu0 %v1760
      %v1959 = vpop.f32.mrb[0].mxu0
      %v1960 = vadd.f32 %v1067, %v1959
      %v1961 = vpop.f32.mrb[0].mxu0
      %1962 = vmatprep.mubr.f32.mxu0 0.0
      %1963 = vmatmul.mubr.f32.gmra.mrb[0].mxu0 %v1762
      %v1964 = vpop.f32.mrb[0].mxu0
      %v1965 = vadd.f32 %v1067, %v1964
      %v1966 = vpop.f32.mrb[0].mxu0
      %1967 = vmatprep.mubr.f32.mxu0 0.0
      %1968 = vmatmul.mubr.f32.gmra.mrb[0].mxu0 %v1764
      %v1969 = vpop.f32.mrb[0].mxu0
      %v1970 = vadd.f32 %v1067, %v1969
      %v1971 = vpop.f32.mrb[0].mxu0
      %1972 = vmatprep.mubr.f32.mxu0 0.0
      %1973 = vmatmul.mubr.f32.gmra.mrb[0].mxu0 %v1766
      %v1974 = vpop.f32.mrb[0].mxu0
      %v1975 = vadd.f32 %v1067, %v1974
      %v1976 = vpop.f32.mrb[0].mxu0
      %1977 = vmatprep.mubr.f32.mxu0 0.0
      %1978 = vmatmul.mubr.f32.gmra.mrb[0].mxu0 %v1768
      %v1979 = vpop.f32.mrb[0].mxu0
      %v1980 = vadd.f32 %v1067, %v1979
      %v1981 = vpop.f32.mrb[0].mxu0
      %1982 = vmatprep.mubr.f32.mxu0 0.0
      %1983 = vmatmul.mubr.f32.gmra.mrb[0].mxu0 %v1770
      %v1984 = vpop.f32.mrb[0].mxu0
      %v1985 = vadd.f32 %v1067, %v1984
      %v1986 = vpop.f32.mrb[0].mxu0
      %1987 = vmatprep.mubr.f32.mxu0 0.0
      %1988 = vmatmul.mubr.f32.gmra.mrb[0].mxu0 %v1772
      %v1989 = vpop.f32.mrb[0].mxu0
      %v1990 = vadd.f32 %v1067, %v1989
      %v1991 = vpop.f32.mrb[0].mxu0
      %1992 = vmatprep.mubr.f32.mxu0 0.0
      %1993 = vmatmul.mubr.f32.gmra.mrb[0].mxu0 %v1774
      %v1994 = vpop.f32.mrb[0].mxu0
      %v1995 = vadd.f32 %v1067, %v1994
      %v1996 = vpop.f32.mrb[0].mxu0
      %1997 = vmatprep.mubr.f32.mxu0 0.0
      %1998 = vmatmul.mubr.f32.gmra.mrb[0].mxu0 %v1776
      %v1999 = vpop.f32.mrb[0].mxu0
      %v2000 = vadd.f32 %v1067, %v1999
      %v2001 = vpop.f32.mrb[0].mxu0
      %2002 = vdwg.mxu0
      %2035 = vrot.lane.b32.xlu0 %v1845, 4
      %v2036 = vpop.permute.xlu0 %2035
      %2037 = vrot.lane.b32.xlu0 %v1850, 4
      %v2038 = vpop.permute.xlu0 %2037
      %2039 = vrot.lane.b32.xlu0 %v1855, 4
      %v2040 = vpop.permute.xlu0 %2039
      %2041 = vrot.lane.b32.xlu0 %v1860, 4
      %v2042 = vpop.permute.xlu0 %2041
      %2043 = vrot.lane.b32.xlu0 %v1865, 4
      %v2044 = vpop.permute.xlu0 %2043
      %2045 = vrot.lane.b32.xlu0 %v1870, 4
      %v2046 = vpop.permute.xlu0 %2045
      %2047 = vrot.lane.b32.xlu0 %v1875, 4
      %v2048 = vpop.permute.xlu0 %2047
      %2049 = vrot.lane.b32.xlu0 %v1880, 4
      %v2050 = vpop.permute.xlu0 %2049
      %2051 = vrot.lane.b32.xlu0 %v1885, 4
      %v2052 = vpop.permute.xlu0 %2051
      %2053 = vrot.lane.b32.xlu0 %v1890, 4
      %v2054 = vpop.permute.xlu0 %2053
      %2055 = vrot.lane.b32.xlu0 %v1895, 4
      %v2056 = vpop.permute.xlu0 %2055
      %2057 = vrot.lane.b32.xlu0 %v1900, 4
      %v2058 = vpop.permute.xlu0 %2057
      %2059 = vrot.lane.b32.xlu0 %v1905, 4
      %v2060 = vpop.permute.xlu0 %2059
      %2061 = vrot.lane.b32.xlu0 %v1910, 4
      %v2062 = vpop.permute.xlu0 %2061
      %2063 = vrot.lane.b32.xlu0 %v1915, 4
      %v2064 = vpop.permute.xlu0 %2063
      %2065 = vrot.lane.b32.xlu0 %v1920, 4
      %v2066 = vpop.permute.xlu0 %2065
      %2067 = vrot.lane.b32.xlu0 %v1925, 4
      %v2068 = vpop.permute.xlu0 %2067
      %2069 = vrot.lane.b32.xlu0 %v1930, 4
      %v2070 = vpop.permute.xlu0 %2069
      %2071 = vrot.lane.b32.xlu0 %v1935, 4
      %v2072 = vpop.permute.xlu0 %2071
      %2073 = vrot.lane.b32.xlu0 %v1940, 4
      %v2074 = vpop.permute.xlu0 %2073
      %2075 = vrot.lane.b32.xlu0 %v1945, 4
      %v2076 = vpop.permute.xlu0 %2075
      %2077 = vrot.lane.b32.xlu0 %v1950, 4
      %v2078 = vpop.permute.xlu0 %2077
      %2079 = vrot.lane.b32.xlu0 %v1955, 4
      %v2080 = vpop.permute.xlu0 %2079
      %2081 = vrot.lane.b32.xlu0 %v1960, 4
      %v2082 = vpop.permute.xlu0 %2081
      %2083 = vrot.lane.b32.xlu0 %v1965, 4
      %v2084 = vpop.permute.xlu0 %2083
      %2085 = vrot.lane.b32.xlu0 %v1970, 4
      %v2086 = vpop.permute.xlu0 %2085
      %2087 = vrot.lane.b32.xlu0 %v1975, 4
      %v2088 = vpop.permute.xlu0 %2087
      %2089 = vrot.lane.b32.xlu0 %v1980, 4
      %v2090 = vpop.permute.xlu0 %2089
      %2091 = vrot.lane.b32.xlu0 %v1985, 4
      %v2092 = vpop.permute.xlu0 %2091
      %2093 = vrot.lane.b32.xlu0 %v1990, 4
      %v2094 = vpop.permute.xlu0 %2093
      %2095 = vrot.lane.b32.xlu0 %v1995, 4
      %v2096 = vpop.permute.xlu0 %2095
      %2097 = vrot.lane.b32.xlu0 %v2000, 4
      %v2098 = vpop.permute.xlu0 %2097
      %vm2131 = vcmask 64544
      %2132 = vst.msk [vmem:[%s335] sm:$0xff] %vm2131, %v2036
      %2133 = vst.msk [vmem:[%s335 + $0x8] sm:$0xff] %vm2131, %v2038
      %2134 = vst.msk [vmem:[%s335 + $0x20] sm:$0xff] %vm2131, %v2040
      %2135 = vst.msk [vmem:[%s335 + $0x28] sm:$0xff] %vm2131, %v2042
      %2136 = vst.msk [vmem:[%s335 + $0x40] sm:$0xff] %vm2131, %v2044
      %2137 = vst.msk [vmem:[%s335 + $0x48] sm:$0xff] %vm2131, %v2046
      %2138 = vst.msk [vmem:[%s335 + $0x60] sm:$0xff] %vm2131, %v2048
      %2139 = vst.msk [vmem:[%s335 + $0x68] sm:$0xff] %vm2131, %v2050
      %2140 = vst.msk [vmem:[%s335 + $0x80] sm:$0xff] %vm2131, %v2052
      %2141 = vst.msk [vmem:[%s335 + $0x88] sm:$0xff] %vm2131, %v2054
      %2142 = vst.msk [vmem:[%s335 + $0xa0] sm:$0xff] %vm2131, %v2056
      %2143 = vst.msk [vmem:[%s335 + $0xa8] sm:$0xff] %vm2131, %v2058
      %2144 = vst.msk [vmem:[%s335 + $0xc0] sm:$0xff] %vm2131, %v2060
      %2145 = vst.msk [vmem:[%s335 + $0xc8] sm:$0xff] %vm2131, %v2062
      %2146 = vst.msk [vmem:[%s335 + $0xe0] sm:$0xff] %vm2131, %v2064
      %2147 = vst.msk [vmem:[%s335 + $0xe8] sm:$0xff] %vm2131, %v2066
      %2148 = vst.msk [vmem:[%s335 + $0x100] sm:$0xff] %vm2131, %v2068
      %2149 = vst.msk [vmem:[%s335 + $0x108] sm:$0xff] %vm2131, %v2070
      %2150 = vst.msk [vmem:[%s335 + $0x120] sm:$0xff] %vm2131, %v2072
      %2151 = vst.msk [vmem:[%s335 + $0x128] sm:$0xff] %vm2131, %v2074
      %2152 = vst.msk [vmem:[%s335 + $0x140] sm:$0xff] %vm2131, %v2076
      %2153 = vst.msk [vmem:[%s335 + $0x148] sm:$0xff] %vm2131, %v2078
      %2154 = vst.msk [vmem:[%s335 + $0x160] sm:$0xff] %vm2131, %v2080
      %2155 = vst.msk [vmem:[%s335 + $0x168] sm:$0xff] %vm2131, %v2082
      %2156 = vst.msk [vmem:[%s335 + $0x180] sm:$0xff] %vm2131, %v2084
      %2157 = vst.msk [vmem:[%s335 + $0x188] sm:$0xff] %vm2131, %v2086
      %2158 = vst.msk [vmem:[%s335 + $0x1a0] sm:$0xff] %vm2131, %v2088
      %2159 = vst.msk [vmem:[%s335 + $0x1a8] sm:$0xff] %vm2131, %v2090
      %2160 = vst.msk [vmem:[%s335 + $0x1c0] sm:$0xff] %vm2131, %v2092
      %2161 = vst.msk [vmem:[%s335 + $0x1c8] sm:$0xff] %vm2131, %v2094
      %2162 = vst.msk [vmem:[%s335 + $0x1e0] sm:$0xff] %vm2131, %v2096
      %2163 = vst.msk [vmem:[%s335 + $0x1e8] sm:$0xff] %vm2131, %v2098
      %2164 = vrot.lane.b32.xlu0 %v863, 4
      %v2165 = vpop.permute.xlu0 %2164
      %2166 = vrot.lane.b32.xlu0 %v865, 4
      %v2167 = vpop.permute.xlu0 %2166
      %2171 = vrot.lane.b32.xlu0 %v534, 8
      %v2172 = vpop.permute.xlu0 %2171
      %2173 = vrot.lane.b32.xlu0 %v463, 8
      %v2174 = vpop.permute.xlu0 %2173
      %v2178 = vrot.slane %v534, 1
      %v2179 = vrot.slane %v463, 1
      %v2180 = vsel %vm586, %v2178, %v2179
      %v2181 = vrot.slane %v552, 1
      %v2182 = vsel %vm586, %v2179, %v2181
      %2183 = vrot.lane.b32.xlu0 %v2180, 12
      %v2184 = vpop.permute.xlu0 %2183
      %2185 = vrot.lane.b32.xlu0 %v2182, 12
      %v2186 = vpop.permute.xlu0 %2185
      %v2189 = vsel %vm962, %v533, %v2165
      %v2190 = vsel %vm962, %v460, %v2167
      %v2191 = vsel %vm995, %v2189, %v2172
      %v2192 = vsel %vm995, %v2190, %v2174
      %v2193 = vsel %vm1028, %v2191, %v2184
      %v2194 = vsel %vm1028, %v2192, %v2186
      %s2195 = scalar_lea.vmem %s3, 32
      %v2196 = vld [vmem:[%s2195] sm:$0xff]
      %v2197 = vld [vmem:[%s2195 + $0x8] sm:$0xff]
      %v2199 = vsel %vm1069, %v2193, 0
      %v2202 = vsel %vm1069, %v2194, 0
      %2204 = vmatprep.subr.mxu0 0.0
      %2205 = vmatpush1.msra.mxu0 %v2196
      %2206 = vmatprep.subr.mxu0 0.0
      %2207 = vmatpush1.msra.mxu0 %v2197
      %2208 = vmatprep.subr.mxu0 0.0
      %2209 = vmatpush1.msra.mxu0 0.0
      %2210 = vmatprep.subr.mxu0 0.0
      %2211 = vmatpush1.msra.mxu0 0.0
      %2212 = vmatprep.subr.mxu0 0.0
      %2213 = vmatpush1.msra.mxu0 0.0
      %2214 = vmatprep.subr.mxu0 0.0
      %2215 = vmatpush1.msra.mxu0 0.0
      %2216 = vmatprep.subr.mxu0 0.0
      %2217 = vmatpush1.msra.mxu0 0.0
      %2218 = vmatprep.subr.mxu0 0.0
      %2219 = vmatpush1.msra.mxu0 0.0
      %2220 = vmatprep.subr.mxu0 0.0
      %2221 = vmatpush1.msra.mxu0 0.0
      %2222 = vmatprep.subr.mxu0 0.0
      %2223 = vmatpush1.msra.mxu0 0.0
      %2224 = vmatprep.subr.mxu0 0.0
      %2225 = vmatpush1.msra.mxu0 0.0
      %2226 = vmatprep.subr.mxu0 0.0
      %2227 = vmatpush1.msra.mxu0 0.0
      %2228 = vmatprep.subr.mxu0 0.0
      %2229 = vmatpush1.msra.mxu0 0.0
      %2230 = vmatprep.subr.mxu0 0.0
      %2231 = vmatpush1.msra.mxu0 0.0
      %2232 = vmatprep.subr.mxu0 0.0
      %2233 = vmatpush1.msra.mxu0 0.0
      %2234 = vmatprep.subr.mxu0 0.0
      %2235 = vmatpush1.msra.mxu0 0.0
      %2236 = vmatprep.subr.mxu0 0.0
      %2237 = vmatpush1.msra.mxu0 0.0
      %2238 = vmatprep.subr.mxu0 0.0
      %2239 = vmatpush1.msra.mxu0 0.0
      %2240 = vmatprep.subr.mxu0 0.0
      %2241 = vmatpush1.msra.mxu0 0.0
      %2242 = vmatprep.subr.mxu0 0.0
      %2243 = vmatpush1.msra.mxu0 0.0
      %2244 = vmatprep.subr.mxu0 0.0
      %2245 = vmatpush1.msra.mxu0 0.0
      %2246 = vmatprep.subr.mxu0 0.0
      %2247 = vmatpush1.msra.mxu0 0.0
      %2248 = vmatprep.subr.mxu0 0.0
      %2249 = vmatpush1.msra.mxu0 0.0
      %2250 = vmatprep.subr.mxu0 0.0
      %2251 = vmatpush1.msra.mxu0 0.0
      %2252 = vmatprep.subr.mxu0 0.0
      %2253 = vmatpush1.msra.mxu0 0.0
      %2254 = vmatprep.subr.mxu0 0.0
      %2255 = vmatpush1.msra.mxu0 0.0
      %2256 = vmatprep.subr.mxu0 0.0
      %2257 = vmatpush1.msra.mxu0 0.0
      %2258 = vmatprep.subr.mxu0 0.0
      %2259 = vmatpush1.msra.mxu0 0.0
      %2260 = vmatprep.subr.mxu0 0.0
      %2261 = vmatpush1.msra.mxu0 0.0
      %2262 = vmatprep.subr.mxu0 0.0
      %2263 = vmatpush1.msra.mxu0 0.0
      %2264 = vmatprep.subr.mxu0 0.0
      %2265 = vmatpush1.msra.mxu0 0.0
      %2266 = vmatprep.subr.mxu0 0.0
      %2267 = vmatpush1.msra.mxu0 0.0
      %2268 = vmatprep.mubr.f32.mxu0 0.0
      %2269 = vmatmul.mubr.f32.gmra.mrb[0].mxu0 %v1077
      %v2270 = vpop.f32.mrb[0].mxu0
      %v2271 = vadd.f32 %v1067, %v2270
      %v2272 = vpop.f32.mrb[0].mxu0
      %2273 = vmatprep.mubr.f32.mxu0 0.0
      %2274 = vmatmul.mubr.f32.gmra.mrb[0].mxu0 %v1080
      %v2275 = vpop.f32.mrb[0].mxu0
      %v2276 = vadd.f32 %v1067, %v2275
      %v2277 = vpop.f32.mrb[0].mxu0
      %2278 = vmatprep.mubr.f32.mxu0 0.0
      %2279 = vmatmul.mubr.f32.gmra.mrb[0].mxu0 %v1083
      %v2280 = vpop.f32.mrb[0].mxu0
      %v2281 = vadd.f32 %v1067, %v2280
      %v2282 = vpop.f32.mrb[0].mxu0
      %2283 = vmatprep.mubr.f32.mxu0 0.0
      %2284 = vmatmul.mubr.f32.gmra.mrb[0].mxu0 %v1086
      %v2285 = vpop.f32.mrb[0].mxu0
      %v2286 = vadd.f32 %v1067, %v2285
      %v2287 = vpop.f32.mrb[0].mxu0
      %2288 = vmatprep.mubr.f32.mxu0 0.0
      %2289 = vmatmul.mubr.f32.gmra.mrb[0].mxu0 %v1089
      %v2290 = vpop.f32.mrb[0].mxu0
      %v2291 = vadd.f32 %v1067, %v2290
      %v2292 = vpop.f32.mrb[0].mxu0
      %2293 = vmatprep.mubr.f32.mxu0 0.0
      %2294 = vmatmul.mubr.f32.gmra.mrb[0].mxu0 %v1092
      %v2295 = vpop.f32.mrb[0].mxu0
      %v2296 = vadd.f32 %v1067, %v2295
      %v2297 = vpop.f32.mrb[0].mxu0
      %2298 = vmatprep.mubr.f32.mxu0 0.0
      %2299 = vmatmul.mubr.f32.gmra.mrb[0].mxu0 %v1095
      %v2300 = vpop.f32.mrb[0].mxu0
      %v2301 = vadd.f32 %v1067, %v2300
      %v2302 = vpop.f32.mrb[0].mxu0
      %2303 = vmatprep.mubr.f32.mxu0 0.0
      %2304 = vmatmul.mubr.f32.gmra.mrb[0].mxu0 %v1098
      %v2305 = vpop.f32.mrb[0].mxu0
      %v2306 = vadd.f32 %v1067, %v2305
      %v2307 = vpop.f32.mrb[0].mxu0
      %2308 = vmatprep.mubr.f32.mxu0 0.0
      %2309 = vmatmul.mubr.f32.gmra.mrb[0].mxu0 %v1101
      %v2310 = vpop.f32.mrb[0].mxu0
      %v2311 = vadd.f32 %v1067, %v2310
      %v2312 = vpop.f32.mrb[0].mxu0
      %2313 = vmatprep.mubr.f32.mxu0 0.0
      %2314 = vmatmul.mubr.f32.gmra.mrb[0].mxu0 %v1104
      %v2315 = vpop.f32.mrb[0].mxu0
      %v2316 = vadd.f32 %v1067, %v2315
      %v2317 = vpop.f32.mrb[0].mxu0
      %2318 = vmatprep.mubr.f32.mxu0 0.0
      %2319 = vmatmul.mubr.f32.gmra.mrb[0].mxu0 %v1107
      %v2320 = vpop.f32.mrb[0].mxu0
      %v2321 = vadd.f32 %v1067, %v2320
      %v2322 = vpop.f32.mrb[0].mxu0
      %2323 = vmatprep.mubr.f32.mxu0 0.0
      %2324 = vmatmul.mubr.f32.gmra.mrb[0].mxu0 %v1110
      %v2325 = vpop.f32.mrb[0].mxu0
      %v2326 = vadd.f32 %v1067, %v2325
      %v2327 = vpop.f32.mrb[0].mxu0
      %2328 = vmatprep.mubr.f32.mxu0 0.0
      %2329 = vmatmul.mubr.f32.gmra.mrb[0].mxu0 %v1113
      %v2330 = vpop.f32.mrb[0].mxu0
      %v2331 = vadd.f32 %v1067, %v2330
      %v2332 = vpop.f32.mrb[0].mxu0
      %2333 = vmatprep.mubr.f32.mxu0 0.0
      %2334 = vmatmul.mubr.f32.gmra.mrb[0].mxu0 %v1116
      %v2335 = vpop.f32.mrb[0].mxu0
      %v2336 = vadd.f32 %v1067, %v2335
      %v2337 = vpop.f32.mrb[0].mxu0
      %2338 = vmatprep.mubr.f32.mxu0 0.0
      %2339 = vmatmul.mubr.f32.gmra.mrb[0].mxu0 %v1119
      %v2340 = vpop.f32.mrb[0].mxu0
      %v2341 = vadd.f32 %v1067, %v2340
      %v2342 = vpop.f32.mrb[0].mxu0
      %2343 = vmatprep.mubr.f32.mxu0 0.0
      %2344 = vmatmul.mubr.f32.gmra.mrb[0].mxu0 %v1122
      %v2345 = vpop.f32.mrb[0].mxu0
      %v2346 = vadd.f32 %v1067, %v2345
      %v2347 = vpop.f32.mrb[0].mxu0
      %2348 = vmatprep.mubr.f32.mxu0 0.0
      %2349 = vmatmul.mubr.f32.gmra.mrb[0].mxu0 %v1125
      %v2350 = vpop.f32.mrb[0].mxu0
      %v2351 = vadd.f32 %v1067, %v2350
      %v2352 = vpop.f32.mrb[0].mxu0
      %2353 = vmatprep.mubr.f32.mxu0 0.0
      %2354 = vmatmul.mubr.f32.gmra.mrb[0].mxu0 %v1128
      %v2355 = vpop.f32.mrb[0].mxu0
      %v2356 = vadd.f32 %v1067, %v2355
      %v2357 = vpop.f32.mrb[0].mxu0
      %2358 = vmatprep.mubr.f32.mxu0 0.0
      %2359 = vmatmul.mubr.f32.gmra.mrb[0].mxu0 %v1131
      %v2360 = vpop.f32.mrb[0].mxu0
      %v2361 = vadd.f32 %v1067, %v2360
      %v2362 = vpop.f32.mrb[0].mxu0
      %2363 = vmatprep.mubr.f32.mxu0 0.0
      %2364 = vmatmul.mubr.f32.gmra.mrb[0].mxu0 %v1134
      %v2365 = vpop.f32.mrb[0].mxu0
      %v2366 = vadd.f32 %v1067, %v2365
      %v2367 = vpop.f32.mrb[0].mxu0
      %2368 = vmatprep.mubr.f32.mxu0 0.0
      %2369 = vmatmul.mubr.f32.gmra.mrb[0].mxu0 %v1137
      %v2370 = vpop.f32.mrb[0].mxu0
      %v2371 = vadd.f32 %v1067, %v2370
      %v2372 = vpop.f32.mrb[0].mxu0
      %2373 = vmatprep.mubr.f32.mxu0 0.0
      %2374 = vmatmul.mubr.f32.gmra.mrb[0].mxu0 %v1140
      %v2375 = vpop.f32.mrb[0].mxu0
      %v2376 = vadd.f32 %v1067, %v2375
      %v2377 = vpop.f32.mrb[0].mxu0
      %2378 = vmatprep.mubr.f32.mxu0 0.0
      %2379 = vmatmul.mubr.f32.gmra.mrb[0].mxu0 %v1143
      %v2380 = vpop.f32.mrb[0].mxu0
      %v2381 = vadd.f32 %v1067, %v2380
      %v2382 = vpop.f32.mrb[0].mxu0
      %2383 = vmatprep.mubr.f32.mxu0 0.0
      %2384 = vmatmul.mubr.f32.gmra.mrb[0].mxu0 %v1146
      %v2385 = vpop.f32.mrb[0].mxu0
      %v2386 = vadd.f32 %v1067, %v2385
      %v2387 = vpop.f32.mrb[0].mxu0
      %2388 = vmatprep.mubr.f32.mxu0 0.0
      %2389 = vmatmul.mubr.f32.gmra.mrb[0].mxu0 %v1149
      %v2390 = vpop.f32.mrb[0].mxu0
      %v2391 = vadd.f32 %v1067, %v2390
      %v2392 = vpop.f32.mrb[0].mxu0
      %2393 = vmatprep.mubr.f32.mxu0 0.0
      %2394 = vmatmul.mubr.f32.gmra.mrb[0].mxu0 %v1152
      %v2395 = vpop.f32.mrb[0].mxu0
      %v2396 = vadd.f32 %v1067, %v2395
      %v2397 = vpop.f32.mrb[0].mxu0
      %2398 = vmatprep.mubr.f32.mxu0 0.0
      %2399 = vmatmul.mubr.f32.gmra.mrb[0].mxu0 %v1155
      %v2400 = vpop.f32.mrb[0].mxu0
      %v2401 = vadd.f32 %v1067, %v2400
      %v2402 = vpop.f32.mrb[0].mxu0
      %2403 = vmatprep.mubr.f32.mxu0 0.0
      %2404 = vmatmul.mubr.f32.gmra.mrb[0].mxu0 %v1158
      %v2405 = vpop.f32.mrb[0].mxu0
      %v2406 = vadd.f32 %v1067, %v2405
      %v2407 = vpop.f32.mrb[0].mxu0
      %2408 = vmatprep.mubr.f32.mxu0 0.0
      %2409 = vmatmul.mubr.f32.gmra.mrb[0].mxu0 %v1161
      %v2410 = vpop.f32.mrb[0].mxu0
      %v2411 = vadd.f32 %v1067, %v2410
      %v2412 = vpop.f32.mrb[0].mxu0
      %2413 = vmatprep.mubr.f32.mxu0 0.0
      %2414 = vmatmul.mubr.f32.gmra.mrb[0].mxu0 %v1164
      %v2415 = vpop.f32.mrb[0].mxu0
      %v2416 = vadd.f32 %v1067, %v2415
      %v2417 = vpop.f32.mrb[0].mxu0
      %2418 = vmatprep.mubr.f32.mxu0 0.0
      %2419 = vmatmul.mubr.f32.gmra.mrb[0].mxu0 %v2199
      %v2420 = vpop.f32.mrb[0].mxu0
      %v2421 = vadd.f32 %v1067, %v2420
      %v2422 = vpop.f32.mrb[0].mxu0
      %2423 = vmatprep.mubr.f32.mxu0 0.0
      %2424 = vmatmul.mubr.f32.gmra.mrb[0].mxu0 %v2202
      %v2425 = vpop.f32.mrb[0].mxu0
      %v2426 = vadd.f32 %v1067, %v2425
      %v2427 = vpop.f32.mrb[0].mxu0
      %2428 = vdwg.mxu0
      %s2429 = scalar_lea.vmem %s335, 16
      %2430 = vst.msk [vmem:[%s2429] sm:$0xff] %vm962, %v2271
      %2431 = vst.msk [vmem:[%s2429 + $0x8] sm:$0xff] %vm962, %v2276
      %2432 = vst.msk [vmem:[%s2429 + $0x20] sm:$0xff] %vm962, %v2281
      %2433 = vst.msk [vmem:[%s2429 + $0x28] sm:$0xff] %vm962, %v2286
      %2434 = vst.msk [vmem:[%s2429 + $0x40] sm:$0xff] %vm962, %v2291
      %2435 = vst.msk [vmem:[%s2429 + $0x48] sm:$0xff] %vm962, %v2296
      %2436 = vst.msk [vmem:[%s2429 + $0x60] sm:$0xff] %vm962, %v2301
      %2437 = vst.msk [vmem:[%s2429 + $0x68] sm:$0xff] %vm962, %v2306
      %2438 = vst.msk [vmem:[%s2429 + $0x80] sm:$0xff] %vm962, %v2311
      %2439 = vst.msk [vmem:[%s2429 + $0x88] sm:$0xff] %vm962, %v2316
      %2440 = vst.msk [vmem:[%s2429 + $0xa0] sm:$0xff] %vm962, %v2321
      %2441 = vst.msk [vmem:[%s2429 + $0xa8] sm:$0xff] %vm962, %v2326
      %2442 = vst.msk [vmem:[%s2429 + $0xc0] sm:$0xff] %vm962, %v2331
      %2443 = vst.msk [vmem:[%s2429 + $0xc8] sm:$0xff] %vm962, %v2336
      %2444 = vst.msk [vmem:[%s2429 + $0xe0] sm:$0xff] %vm962, %v2341
      %2445 = vst.msk [vmem:[%s2429 + $0xe8] sm:$0xff] %vm962, %v2346
      %2446 = vst.msk [vmem:[%s2429 + $0x100] sm:$0xff] %vm962, %v2351
      %2447 = vst.msk [vmem:[%s2429 + $0x108] sm:$0xff] %vm962, %v2356
      %2448 = vst.msk [vmem:[%s2429 + $0x120] sm:$0xff] %vm962, %v2361
      %2449 = vst.msk [vmem:[%s2429 + $0x128] sm:$0xff] %vm962, %v2366
      %2450 = vst.msk [vmem:[%s2429 + $0x140] sm:$0xff] %vm962, %v2371
      %2451 = vst.msk [vmem:[%s2429 + $0x148] sm:$0xff] %vm962, %v2376
      %2452 = vst.msk [vmem:[%s2429 + $0x160] sm:$0xff] %vm962, %v2381
      %2453 = vst.msk [vmem:[%s2429 + $0x168] sm:$0xff] %vm962, %v2386
      %2454 = vst.msk [vmem:[%s2429 + $0x180] sm:$0xff] %vm962, %v2391
      %2455 = vst.msk [vmem:[%s2429 + $0x188] sm:$0xff] %vm962, %v2396
      %2456 = vst.msk [vmem:[%s2429 + $0x1a0] sm:$0xff] %vm962, %v2401
      %2457 = vst.msk [vmem:[%s2429 + $0x1a8] sm:$0xff] %vm962, %v2406
      %2458 = vst.msk [vmem:[%s2429 + $0x1c0] sm:$0xff] %vm962, %v2411
      %2459 = vst.msk [vmem:[%s2429 + $0x1c8] sm:$0xff] %vm962, %v2416
      %2460 = vst.msk [vmem:[%s2429 + $0x1e0] sm:$0xff] %vm962, %v2421
      %2461 = vst.msk [vmem:[%s2429 + $0x1e8] sm:$0xff] %vm962, %v2426
      %2462 = vrot.lane.b32.xlu0 %v864, 4
      %v2463 = vpop.permute.xlu0 %2462
      %2465 = vrot.lane.b32.xlu0 %v552, 8
      %v2466 = vpop.permute.xlu0 %2465
      %2468 = vrot.lane.b32.xlu0 %v2181, 12
      %v2469 = vpop.permute.xlu0 %2468
      %v2471 = vsel %vm962, %v551, %v2463
      %v2472 = vsel %vm995, %v2471, %v2466
      %v2473 = vsel %vm1028, %v2472, %v2469
      %v2475 = vrot.slane %v2193, 1
      %v2476 = vrot.slane %v2194, 1
      %v2477 = vsel %vm586, %v2475, %v2476
      %v2478 = vrot.slane %v2473, 1
      %v2479 = vsel %vm586, %v2476, %v2478
      %s2480 = scalar_lea.vmem %s3, 48
      %v2481 = vld [vmem:[%s2480] sm:$0xff]
      %v2482 = vld [vmem:[%s2480 + $0x8] sm:$0xff]
      %v2483 = vsel %vm1069, %v2477, 0
      %v2485 = vsel %vm1069, %v2479, 0
      %2487 = vmatprep.subr.mxu0 0.0
      %2488 = vmatpush1.msra.mxu0 %v2481
      %2489 = vmatprep.subr.mxu0 0.0
      %2490 = vmatpush1.msra.mxu0 %v2482
      %2491 = vmatprep.subr.mxu0 0.0
      %2492 = vmatpush1.msra.mxu0 0.0
      %2493 = vmatprep.subr.mxu0 0.0
      %2494 = vmatpush1.msra.mxu0 0.0
      %2495 = vmatprep.subr.mxu0 0.0
      %2496 = vmatpush1.msra.mxu0 0.0
      %2497 = vmatprep.subr.mxu0 0.0
      %2498 = vmatpush1.msra.mxu0 0.0
      %2499 = vmatprep.subr.mxu0 0.0
      %2500 = vmatpush1.msra.mxu0 0.0
      %2501 = vmatprep.subr.mxu0 0.0
      %2502 = vmatpush1.msra.mxu0 0.0
      %2503 = vmatprep.subr.mxu0 0.0
      %2504 = vmatpush1.msra.mxu0 0.0
      %2505 = vmatprep.subr.mxu0 0.0
      %2506 = vmatpush1.msra.mxu0 0.0
      %2507 = vmatprep.subr.mxu0 0.0
      %2508 = vmatpush1.msra.mxu0 0.0
      %2509 = vmatprep.subr.mxu0 0.0
      %2510 = vmatpush1.msra.mxu0 0.0
      %2511 = vmatprep.subr.mxu0 0.0
      %2512 = vmatpush1.msra.mxu0 0.0
      %2513 = vmatprep.subr.mxu0 0.0
      %2514 = vmatpush1.msra.mxu0 0.0
      %2515 = vmatprep.subr.mxu0 0.0
      %2516 = vmatpush1.msra.mxu0 0.0
      %2517 = vmatprep.subr.mxu0 0.0
      %2518 = vmatpush1.msra.mxu0 0.0
      %2519 = vmatprep.subr.mxu0 0.0
      %2520 = vmatpush1.msra.mxu0 0.0
      %2521 = vmatprep.subr.mxu0 0.0
      %2522 = vmatpush1.msra.mxu0 0.0
      %2523 = vmatprep.subr.mxu0 0.0
      %2524 = vmatpush1.msra.mxu0 0.0
      %2525 = vmatprep.subr.mxu0 0.0
      %2526 = vmatpush1.msra.mxu0 0.0
      %2527 = vmatprep.subr.mxu0 0.0
      %2528 = vmatpush1.msra.mxu0 0.0
      %2529 = vmatprep.subr.mxu0 0.0
      %2530 = vmatpush1.msra.mxu0 0.0
      %2531 = vmatprep.subr.mxu0 0.0
      %2532 = vmatpush1.msra.mxu0 0.0
      %2533 = vmatprep.subr.mxu0 0.0
      %2534 = vmatpush1.msra.mxu0 0.0
      %2535 = vmatprep.subr.mxu0 0.0
      %2536 = vmatpush1.msra.mxu0 0.0
      %2537 = vmatprep.subr.mxu0 0.0
      %2538 = vmatpush1.msra.mxu0 0.0
      %2539 = vmatprep.subr.mxu0 0.0
      %2540 = vmatpush1.msra.mxu0 0.0
      %2541 = vmatprep.subr.mxu0 0.0
      %2542 = vmatpush1.msra.mxu0 0.0
      %2543 = vmatprep.subr.mxu0 0.0
      %2544 = vmatpush1.msra.mxu0 0.0
      %2545 = vmatprep.subr.mxu0 0.0
      %2546 = vmatpush1.msra.mxu0 0.0
      %2547 = vmatprep.subr.mxu0 0.0
      %2548 = vmatpush1.msra.mxu0 0.0
      %2549 = vmatprep.subr.mxu0 0.0
      %2550 = vmatpush1.msra.mxu0 0.0
      %2551 = vmatprep.mubr.f32.mxu0 0.0
      %2552 = vmatmul.mubr.f32.gmra.mrb[0].mxu0 %v1718
      %v2553 = vpop.f32.mrb[0].mxu0
      %v2554 = vadd.f32 %v1067, %v2553
      %v2555 = vpop.f32.mrb[0].mxu0
      %2556 = vmatprep.mubr.f32.mxu0 0.0
      %2557 = vmatmul.mubr.f32.gmra.mrb[0].mxu0 %v1720
      %v2558 = vpop.f32.mrb[0].mxu0
      %v2559 = vadd.f32 %v1067, %v2558
      %v2560 = vpop.f32.mrb[0].mxu0
      %2561 = vmatprep.mubr.f32.mxu0 0.0
      %2562 = vmatmul.mubr.f32.gmra.mrb[0].mxu0 %v1722
      %v2563 = vpop.f32.mrb[0].mxu0
      %v2564 = vadd.f32 %v1067, %v2563
      %v2565 = vpop.f32.mrb[0].mxu0
      %2566 = vmatprep.mubr.f32.mxu0 0.0
      %2567 = vmatmul.mubr.f32.gmra.mrb[0].mxu0 %v1724
      %v2568 = vpop.f32.mrb[0].mxu0
      %v2569 = vadd.f32 %v1067, %v2568
      %v2570 = vpop.f32.mrb[0].mxu0
      %2571 = vmatprep.mubr.f32.mxu0 0.0
      %2572 = vmatmul.mubr.f32.gmra.mrb[0].mxu0 %v1726
      %v2573 = vpop.f32.mrb[0].mxu0
      %v2574 = vadd.f32 %v1067, %v2573
      %v2575 = vpop.f32.mrb[0].mxu0
      %2576 = vmatprep.mubr.f32.mxu0 0.0
      %2577 = vmatmul.mubr.f32.gmra.mrb[0].mxu0 %v1728
      %v2578 = vpop.f32.mrb[0].mxu0
      %v2579 = vadd.f32 %v1067, %v2578
      %v2580 = vpop.f32.mrb[0].mxu0
      %2581 = vmatprep.mubr.f32.mxu0 0.0
      %2582 = vmatmul.mubr.f32.gmra.mrb[0].mxu0 %v1730
      %v2583 = vpop.f32.mrb[0].mxu0
      %v2584 = vadd.f32 %v1067, %v2583
      %v2585 = vpop.f32.mrb[0].mxu0
      %2586 = vmatprep.mubr.f32.mxu0 0.0
      %2587 = vmatmul.mubr.f32.gmra.mrb[0].mxu0 %v1732
      %v2588 = vpop.f32.mrb[0].mxu0
      %v2589 = vadd.f32 %v1067, %v2588
      %v2590 = vpop.f32.mrb[0].mxu0
      %2591 = vmatprep.mubr.f32.mxu0 0.0
      %2592 = vmatmul.mubr.f32.gmra.mrb[0].mxu0 %v1734
      %v2593 = vpop.f32.mrb[0].mxu0
      %v2594 = vadd.f32 %v1067, %v2593
      %v2595 = vpop.f32.mrb[0].mxu0
      %2596 = vmatprep.mubr.f32.mxu0 0.0
      %2597 = vmatmul.mubr.f32.gmra.mrb[0].mxu0 %v1736
      %v2598 = vpop.f32.mrb[0].mxu0
      %v2599 = vadd.f32 %v1067, %v2598
      %v2600 = vpop.f32.mrb[0].mxu0
      %2601 = vmatprep.mubr.f32.mxu0 0.0
      %2602 = vmatmul.mubr.f32.gmra.mrb[0].mxu0 %v1738
      %v2603 = vpop.f32.mrb[0].mxu0
      %v2604 = vadd.f32 %v1067, %v2603
      %v2605 = vpop.f32.mrb[0].mxu0
      %2606 = vmatprep.mubr.f32.mxu0 0.0
      %2607 = vmatmul.mubr.f32.gmra.mrb[0].mxu0 %v1740
      %v2608 = vpop.f32.mrb[0].mxu0
      %v2609 = vadd.f32 %v1067, %v2608
      %v2610 = vpop.f32.mrb[0].mxu0
      %2611 = vmatprep.mubr.f32.mxu0 0.0
      %2612 = vmatmul.mubr.f32.gmra.mrb[0].mxu0 %v1742
      %v2613 = vpop.f32.mrb[0].mxu0
      %v2614 = vadd.f32 %v1067, %v2613
      %v2615 = vpop.f32.mrb[0].mxu0
      %2616 = vmatprep.mubr.f32.mxu0 0.0
      %2617 = vmatmul.mubr.f32.gmra.mrb[0].mxu0 %v1744
      %v2618 = vpop.f32.mrb[0].mxu0
      %v2619 = vadd.f32 %v1067, %v2618
      %v2620 = vpop.f32.mrb[0].mxu0
      %2621 = vmatprep.mubr.f32.mxu0 0.0
      %2622 = vmatmul.mubr.f32.gmra.mrb[0].mxu0 %v1746
      %v2623 = vpop.f32.mrb[0].mxu0
      %v2624 = vadd.f32 %v1067, %v2623
      %v2625 = vpop.f32.mrb[0].mxu0
      %2626 = vmatprep.mubr.f32.mxu0 0.0
      %2627 = vmatmul.mubr.f32.gmra.mrb[0].mxu0 %v1748
      %v2628 = vpop.f32.mrb[0].mxu0
      %v2629 = vadd.f32 %v1067, %v2628
      %v2630 = vpop.f32.mrb[0].mxu0
      %2631 = vmatprep.mubr.f32.mxu0 0.0
      %2632 = vmatmul.mubr.f32.gmra.mrb[0].mxu0 %v1750
      %v2633 = vpop.f32.mrb[0].mxu0
      %v2634 = vadd.f32 %v1067, %v2633
      %v2635 = vpop.f32.mrb[0].mxu0
      %2636 = vmatprep.mubr.f32.mxu0 0.0
      %2637 = vmatmul.mubr.f32.gmra.mrb[0].mxu0 %v1752
      %v2638 = vpop.f32.mrb[0].mxu0
      %v2639 = vadd.f32 %v1067, %v2638
      %v2640 = vpop.f32.mrb[0].mxu0
      %2641 = vmatprep.mubr.f32.mxu0 0.0
      %2642 = vmatmul.mubr.f32.gmra.mrb[0].mxu0 %v1754
      %v2643 = vpop.f32.mrb[0].mxu0
      %v2644 = vadd.f32 %v1067, %v2643
      %v2645 = vpop.f32.mrb[0].mxu0
      %2646 = vmatprep.mubr.f32.mxu0 0.0
      %2647 = vmatmul.mubr.f32.gmra.mrb[0].mxu0 %v1756
      %v2648 = vpop.f32.mrb[0].mxu0
      %v2649 = vadd.f32 %v1067, %v2648
      %v2650 = vpop.f32.mrb[0].mxu0
      %2651 = vmatprep.mubr.f32.mxu0 0.0
      %2652 = vmatmul.mubr.f32.gmra.mrb[0].mxu0 %v1758
      %v2653 = vpop.f32.mrb[0].mxu0
      %v2654 = vadd.f32 %v1067, %v2653
      %v2655 = vpop.f32.mrb[0].mxu0
      %2656 = vmatprep.mubr.f32.mxu0 0.0
      %2657 = vmatmul.mubr.f32.gmra.mrb[0].mxu0 %v1760
      %v2658 = vpop.f32.mrb[0].mxu0
      %v2659 = vadd.f32 %v1067, %v2658
      %v2660 = vpop.f32.mrb[0].mxu0
      %2661 = vmatprep.mubr.f32.mxu0 0.0
      %2662 = vmatmul.mubr.f32.gmra.mrb[0].mxu0 %v1762
      %v2663 = vpop.f32.mrb[0].mxu0
      %v2664 = vadd.f32 %v1067, %v2663
      %v2665 = vpop.f32.mrb[0].mxu0
      %2666 = vmatprep.mubr.f32.mxu0 0.0
      %2667 = vmatmul.mubr.f32.gmra.mrb[0].mxu0 %v1764
      %v2668 = vpop.f32.mrb[0].mxu0
      %v2669 = vadd.f32 %v1067, %v2668
      %v2670 = vpop.f32.mrb[0].mxu0
      %2671 = vmatprep.mubr.f32.mxu0 0.0
      %2672 = vmatmul.mubr.f32.gmra.mrb[0].mxu0 %v1766
      %v2673 = vpop.f32.mrb[0].mxu0
      %v2674 = vadd.f32 %v1067, %v2673
      %v2675 = vpop.f32.mrb[0].mxu0
      %2676 = vmatprep.mubr.f32.mxu0 0.0
      %2677 = vmatmul.mubr.f32.gmra.mrb[0].mxu0 %v1768
      %v2678 = vpop.f32.mrb[0].mxu0
      %v2679 = vadd.f32 %v1067, %v2678
      %v2680 = vpop.f32.mrb[0].mxu0
      %2681 = vmatprep.mubr.f32.mxu0 0.0
      %2682 = vmatmul.mubr.f32.gmra.mrb[0].mxu0 %v1770
      %v2683 = vpop.f32.mrb[0].mxu0
      %v2684 = vadd.f32 %v1067, %v2683
      %v2685 = vpop.f32.mrb[0].mxu0
      %2686 = vmatprep.mubr.f32.mxu0 0.0
      %2687 = vmatmul.mubr.f32.gmra.mrb[0].mxu0 %v1772
      %v2688 = vpop.f32.mrb[0].mxu0
      %v2689 = vadd.f32 %v1067, %v2688
      %v2690 = vpop.f32.mrb[0].mxu0
      %2691 = vmatprep.mubr.f32.mxu0 0.0
      %2692 = vmatmul.mubr.f32.gmra.mrb[0].mxu0 %v1774
      %v2693 = vpop.f32.mrb[0].mxu0
      %v2694 = vadd.f32 %v1067, %v2693
      %v2695 = vpop.f32.mrb[0].mxu0
      %2696 = vmatprep.mubr.f32.mxu0 0.0
      %2697 = vmatmul.mubr.f32.gmra.mrb[0].mxu0 %v1776
      %v2698 = vpop.f32.mrb[0].mxu0
      %v2699 = vadd.f32 %v1067, %v2698
      %v2700 = vpop.f32.mrb[0].mxu0
      %2701 = vmatprep.mubr.f32.mxu0 0.0
      %2702 = vmatmul.mubr.f32.gmra.mrb[0].mxu0 %v2483
      %v2703 = vpop.f32.mrb[0].mxu0
      %v2704 = vadd.f32 %v1067, %v2703
      %v2705 = vpop.f32.mrb[0].mxu0
      %2706 = vmatprep.mubr.f32.mxu0 0.0
      %2707 = vmatmul.mubr.f32.gmra.mrb[0].mxu0 %v2485
      %v2708 = vpop.f32.mrb[0].mxu0
      %v2709 = vadd.f32 %v1067, %v2708
      %v2710 = vpop.f32.mrb[0].mxu0
      %2711 = vdwg.mxu0
      %2744 = vrot.lane.b32.xlu0 %v2554, 4
      %v2745 = vpop.permute.xlu0 %2744
      %2746 = vrot.lane.b32.xlu0 %v2559, 4
      %v2747 = vpop.permute.xlu0 %2746
      %2748 = vrot.lane.b32.xlu0 %v2564, 4
      %v2749 = vpop.permute.xlu0 %2748
      %2750 = vrot.lane.b32.xlu0 %v2569, 4
      %v2751 = vpop.permute.xlu0 %2750
      %2752 = vrot.lane.b32.xlu0 %v2574, 4
      %v2753 = vpop.permute.xlu0 %2752
      %2754 = vrot.lane.b32.xlu0 %v2579, 4
      %v2755 = vpop.permute.xlu0 %2754
      %2756 = vrot.lane.b32.xlu0 %v2584, 4
      %v2757 = vpop.permute.xlu0 %2756
      %2758 = vrot.lane.b32.xlu0 %v2589, 4
      %v2759 = vpop.permute.xlu0 %2758
      %2760 = vrot.lane.b32.xlu0 %v2594, 4
      %v2761 = vpop.permute.xlu0 %2760
      %2762 = vrot.lane.b32.xlu0 %v2599, 4
      %v2763 = vpop.permute.xlu0 %2762
      %2764 = vrot.lane.b32.xlu0 %v2604, 4
      %v2765 = vpop.permute.xlu0 %2764
      %2766 = vrot.lane.b32.xlu0 %v2609, 4
      %v2767 = vpop.permute.xlu0 %2766
      %2768 = vrot.lane.b32.xlu0 %v2614, 4
      %v2769 = vpop.permute.xlu0 %2768
      %2770 = vrot.lane.b32.xlu0 %v2619, 4
      %v2771 = vpop.permute.xlu0 %2770
      %2772 = vrot.lane.b32.xlu0 %v2624, 4
      %v2773 = vpop.permute.xlu0 %2772
      %2774 = vrot.lane.b32.xlu0 %v2629, 4
      %v2775 = vpop.permute.xlu0 %2774
      %2776 = vrot.lane.b32.xlu0 %v2634, 4
      %v2777 = vpop.permute.xlu0 %2776
      %2778 = vrot.lane.b32.xlu0 %v2639, 4
      %v2779 = vpop.permute.xlu0 %2778
      %2780 = vrot.lane.b32.xlu0 %v2644, 4
      %v2781 = vpop.permute.xlu0 %2780
      %2782 = vrot.lane.b32.xlu0 %v2649, 4
      %v2783 = vpop.permute.xlu0 %2782
      %2784 = vrot.lane.b32.xlu0 %v2654, 4
      %v2785 = vpop.permute.xlu0 %2784
      %2786 = vrot.lane.b32.xlu0 %v2659, 4
      %v2787 = vpop.permute.xlu0 %2786
      %2788 = vrot.lane.b32.xlu0 %v2664, 4
      %v2789 = vpop.permute.xlu0 %2788
      %2790 = vrot.lane.b32.xlu0 %v2669, 4
      %v2791 = vpop.permute.xlu0 %2790
      %2792 = vrot.lane.b32.xlu0 %v2674, 4
      %v2793 = vpop.permute.xlu0 %2792
      %2794 = vrot.lane.b32.xlu0 %v2679, 4
      %v2795 = vpop.permute.xlu0 %2794
      %2796 = vrot.lane.b32.xlu0 %v2684, 4
      %v2797 = vpop.permute.xlu0 %2796
      %2798 = vrot.lane.b32.xlu0 %v2689, 4
      %v2799 = vpop.permute.xlu0 %2798
      %2800 = vrot.lane.b32.xlu0 %v2694, 4
      %v2801 = vpop.permute.xlu0 %2800
      %2802 = vrot.lane.b32.xlu0 %v2699, 4
      %v2803 = vpop.permute.xlu0 %2802
      %2804 = vrot.lane.b32.xlu0 %v2704, 4
      %v2805 = vpop.permute.xlu0 %2804
      %2806 = vrot.lane.b32.xlu0 %v2709, 4
      %v2807 = vpop.permute.xlu0 %2806
      %2840 = vst.msk [vmem:[%s2429] sm:$0xff] %vm2131, %v2745
      %2841 = vst.msk [vmem:[%s2429 + $0x8] sm:$0xff] %vm2131, %v2747
      %2842 = vst.msk [vmem:[%s2429 + $0x20] sm:$0xff] %vm2131, %v2749
      %2843 = vst.msk [vmem:[%s2429 + $0x28] sm:$0xff] %vm2131, %v2751
      %2844 = vst.msk [vmem:[%s2429 + $0x40] sm:$0xff] %vm2131, %v2753
      %2845 = vst.msk [vmem:[%s2429 + $0x48] sm:$0xff] %vm2131, %v2755
      %2846 = vst.msk [vmem:[%s2429 + $0x60] sm:$0xff] %vm2131, %v2757
      %2847 = vst.msk [vmem:[%s2429 + $0x68] sm:$0xff] %vm2131, %v2759
      %2848 = vst.msk [vmem:[%s2429 + $0x80] sm:$0xff] %vm2131, %v2761
      %2849 = vst.msk [vmem:[%s2429 + $0x88] sm:$0xff] %vm2131, %v2763
      %2850 = vst.msk [vmem:[%s2429 + $0xa0] sm:$0xff] %vm2131, %v2765
      %2851 = vst.msk [vmem:[%s2429 + $0xa8] sm:$0xff] %vm2131, %v2767
      %2852 = vst.msk [vmem:[%s2429 + $0xc0] sm:$0xff] %vm2131, %v2769
      %2853 = vst.msk [vmem:[%s2429 + $0xc8] sm:$0xff] %vm2131, %v2771
      %2854 = vst.msk [vmem:[%s2429 + $0xe0] sm:$0xff] %vm2131, %v2773
      %2855 = vst.msk [vmem:[%s2429 + $0xe8] sm:$0xff] %vm2131, %v2775
      %2856 = vst.msk [vmem:[%s2429 + $0x100] sm:$0xff] %vm2131, %v2777
      %2857 = vst.msk [vmem:[%s2429 + $0x108] sm:$0xff] %vm2131, %v2779
      %2858 = vst.msk [vmem:[%s2429 + $0x120] sm:$0xff] %vm2131, %v2781
      %2859 = vst.msk [vmem:[%s2429 + $0x128] sm:$0xff] %vm2131, %v2783
      %2860 = vst.msk [vmem:[%s2429 + $0x140] sm:$0xff] %vm2131, %v2785
      %2861 = vst.msk [vmem:[%s2429 + $0x148] sm:$0xff] %vm2131, %v2787
      %2862 = vst.msk [vmem:[%s2429 + $0x160] sm:$0xff] %vm2131, %v2789
      %2863 = vst.msk [vmem:[%s2429 + $0x168] sm:$0xff] %vm2131, %v2791
      %2864 = vst.msk [vmem:[%s2429 + $0x180] sm:$0xff] %vm2131, %v2793
      %2865 = vst.msk [vmem:[%s2429 + $0x188] sm:$0xff] %vm2131, %v2795
      %2866 = vst.msk [vmem:[%s2429 + $0x1a0] sm:$0xff] %vm2131, %v2797
      %2867 = vst.msk [vmem:[%s2429 + $0x1a8] sm:$0xff] %vm2131, %v2799
      %2868 = vst.msk [vmem:[%s2429 + $0x1c0] sm:$0xff] %vm2131, %v2801
      %2869 = vst.msk [vmem:[%s2429 + $0x1c8] sm:$0xff] %vm2131, %v2803
      %2870 = vst.msk [vmem:[%s2429 + $0x1e0] sm:$0xff] %vm2131, %v2805
      %2871 = vst.msk [vmem:[%s2429 + $0x1e8] sm:$0xff] %vm2131, %v2807
      %s2872 = smul.u32 16, %s21
      %p2873 = scmp.lt.s32.totalorder %s20, 1
      %s2874 = scalar_select %p2873, %s20, 1
      %p2875 = scmp.lt.s32.totalorder %s2872, 15
      %s2876 = scalar_select %p2875, %s2872, 15
      %s2877 = smul.addr %s2876, 4
      %s2878 = smul.addr %s2874, 64
      %s2879 = sadd.s32 %s2877, %s2878
      %s2880 = smul.addr %s2879, 8
      %s2881 = scalar_lea.vmem %s5, %s2880
      // Predicated region
      $region41: #{tpu_custom_call.1} parent=39 // pred_check
        %p2882 = pneg %p174
      $region42: #{tpu_custom_call.1} parent=39 // pred_check_branch
        %2884 = sbr.rel (%p2882) target = $region44
      $region43: #{tpu_custom_call.1} parent=39 // pred_region
        %s2885 = smul.u32 16, %s21
      $region44: #{tpu_custom_call.1} parent=39 // pred_fallthru
        _
    $region40: #{tpu_custom_call.1} parent=5 // pred_fallthru
      _
    %p2886 = scmp.le.s32.totalorder 2, %s11
    // Predicated region
    $region45: #{tpu_custom_call.1} parent=5 // pred_check
      %p2887 = pneg %p2886
    $region46: #{tpu_custom_call.1} parent=5 // pred_check_branch
      %2889 = sbr.rel (%p2887) target = $region48
    $region47: #{tpu_custom_call.1} parent=5 // pred_region
      %s2890 = ssub.s32 %s11, 2
      // Predicated region
      $region49: #{tpu_custom_call.1} parent=47 // pred_check
        %p2891 = pneg %p180
      $region50: #{tpu_custom_call.1} parent=47 // pred_check_branch
        %2893 = sbr.rel (%p2891) target = $region52
      $region51: #{tpu_custom_call.1} parent=47 // pred_region
        %s2894 = smul.u32 16, %s23
        %p2895 = scmp.lt.s32.totalorder %s22, 1
        %s2896 = scalar_select %p2895, %s22, 1
        %p2897 = scmp.lt.s32.totalorder %s2894, 15
        %s2898 = scalar_select %p2897, %s2894, 15
        %s2899 = smul.addr %s2898, 4
        %s2900 = smul.addr %s2896, 64
        %s2901 = sadd.s32 %s2899, %s2900
        %s2902 = smul.addr %s2901, 8
        %s2903 = scalar_lea.vmem %s5, %s2902
      $region52: #{tpu_custom_call.1} parent=47 // pred_fallthru
        _
    $region48: #{tpu_custom_call.1} parent=5 // pred_fallthru
      _
  $region6: #{tpu_custom_call.1} parent=0 // loop_footer
    %s15 = sadd.s32 1, %s11
  $region7: #{tpu_custom_call.1} parent=0 // loop_footer_branch
    %10 = sbr.rel target = $region3
  $region8: #{tpu_custom_call.1} parent=0 // loop_exit
    _

</llo_original>
